<compile_context>
chip_gen: v5e
topology: v5e:2x2
jax: 0.10.0
libtpu: 0.0.40
codegen_flags: <defaults>
</compile_context>

<pallas_src>
import functools

import jax
import jax.numpy as jnp
from jax.experimental import pallas as pl
from jax.experimental.pallas import tpu as pltpu


def _attention_rope_kernel(*refs, num_heads, head_dim, scale, has_mask,
                           compute_dtype):
    if has_mask:
        (x_ref, cos_ref, sin_ref, mask_ref,
         wq_ref, wk_ref, wv_ref, wproj_ref, bproj_ref, o_ref) = refs
    else:
        (x_ref, cos_ref, sin_ref,
         wq_ref, wk_ref, wv_ref, wproj_ref, bproj_ref, o_ref) = refs

    H, D = num_heads, head_dim
    x = x_ref[0]                                   # (N, C)
    N, C = x.shape

    cos = cos_ref[0].astype(jnp.float32)           # (N, D)
    sin_s = sin_ref[0].astype(jnp.float32)         # (N, D)  (sign-folded)

    # --- QKV projection: three full-width MXU matmuls, f32 accumulation ---
    x_c = x.astype(compute_dtype)
    q2 = jnp.dot(x_c, wq_ref[...], preferred_element_type=jnp.float32)   # (N, C)
    k2 = jnp.dot(x_c, wk_ref[...], preferred_element_type=jnp.float32)
    v2 = jnp.dot(x_c, wv_ref[...], preferred_element_type=jnp.float32)

    # head-major views: (N, C) -> (H, N, D)
    def to_heads(t):
        return jnp.transpose(t.reshape(N, H, D), (1, 0, 2))

    q = to_heads(q2)                               # (H, N, D) f32
    k = to_heads(k2)
    v = to_heads(v2).astype(compute_dtype)

    # --- RoPE in f32.  rotate_half(t) == sign * roll(t, D//2) with the sign
    # vector folded into sin on the host, so only a roll (XLU) + FMA remain.
    cos_b = cos[None, :, :]
    sin_b = sin_s[None, :, :]
    q = q * cos_b + pltpu.roll(q, D // 2, 2) * sin_b
    k = k * cos_b + pltpu.roll(k, D // 2, 2) * sin_b
    q = q * scale

    qc = q.astype(compute_dtype)
    kc = k.astype(compute_dtype)

    # --- scores: head-batched contraction on the last dim (no explicit k.T) ---
    s = jnp.einsum('hnd,hmd->hnm', qc, kc,
                   preferred_element_type=jnp.float32)          # (H, N, N) f32

    if has_mask:
        s = s + mask_ref[0].astype(jnp.float32)[None, :, :]

    # --- softmax in f32; divide via the (otherwise idle) EUP reciprocal ---
    m = jnp.max(s, axis=-1, keepdims=True)
    e = jnp.exp(s - m)
    denom = jnp.sum(e, axis=-1, keepdims=True)
    p = (e * pl.reciprocal(denom, approx=True)).astype(compute_dtype)

    # --- context: head-batched attn @ v, f32 accumulation ---
    ctx = jnp.einsum('hnm,hmd->hnd', p, v,
                     preferred_element_type=jnp.float32)        # (H, N, D)

    # back to token-major (N, C) and output projection (+ bias)
    ctx2 = jnp.transpose(ctx, (1, 0, 2)).reshape(N, C).astype(compute_dtype)
    out = jnp.dot(ctx2, wproj_ref[...], preferred_element_type=jnp.float32)
    out = out + bproj_ref[...].astype(jnp.float32)              # (1, C) bias
    o_ref[0] = out.astype(o_ref.dtype)


def attention_rope(x, freqs_cos, freqs_sin, w_qkv, w_proj, b_proj, *,
                   num_heads, mask=None, compute_dtype=None):
    """Fused AttentionRoPE forward.

    compute_dtype controls the dtype fed to the MXU dots (accumulation is
    always f32, softmax is always f32).  Defaults to x.dtype, which matches
    the PyTorch module's behavior; pass jnp.bfloat16 to force the bf16 MXU
    fast path for f32 parameters.
    """
    B, N, C = x.shape
    D = C // num_heads
    scale = D ** (-0.5)
    if compute_dtype is None:
        compute_dtype = x.dtype

    # Fold rotate_half's sign pattern into the sin table:
    #   rotate_half(t) * sin == roll(t, D//2) * (sign * sin)
    sign = jnp.concatenate([-jnp.ones((D // 2,), freqs_sin.dtype),
                            jnp.ones((D - D // 2,), freqs_sin.dtype)])
    sin_signed = freqs_sin * sign

    # Split the fused QKV weight and pre-cast parameters to the MXU compute
    # dtype on the host (one-time; keeps per-step VMEM and converts minimal).
    wq = w_qkv[:, :C].astype(compute_dtype)
    wk = w_qkv[:, C:2 * C].astype(compute_dtype)
    wv = w_qkv[:, 2 * C:].astype(compute_dtype)
    wp = w_proj.astype(compute_dtype)
    bp = b_proj.reshape(1, C)

    has_mask = mask is not None

    operands = [x, freqs_cos, sin_signed]
    in_specs = [
        pl.BlockSpec((1, N, C), lambda b: (b, 0, 0)),     # x
        pl.BlockSpec((1, N, D), lambda b: (b, 0, 0)),     # freqs_cos
        pl.BlockSpec((1, N, D), lambda b: (b, 0, 0)),     # freqs_sin (signed)
    ]
    if has_mask:
        mask = jnp.asarray(mask, dtype=jnp.float32)
        if mask.ndim == 2:                                # (N, N) -> (1, N, N)
            mask = mask[None]
        if mask.shape[0] == 1:
            # shared mask: constant block index -> fetched once, never re-DMA'd
            in_specs.append(pl.BlockSpec((1, N, N), lambda b: (0, 0, 0)))
        else:
            in_specs.append(pl.BlockSpec((1, N, N), lambda b: (b, 0, 0)))
        operands.append(mask)

    # Weights: constant index_map -> fetched once and kept resident across the
    # batch grid.  (TODO(synk): pipeline_mode=pl.Buffered(1) could drop the
    # second weight buffer on VMEM-tight configs.)
    in_specs += [
        pl.BlockSpec((C, C), lambda b: (0, 0)),           # w_q
        pl.BlockSpec((C, C), lambda b: (0, 0)),           # w_k
        pl.BlockSpec((C, C), lambda b: (0, 0)),           # w_v
        pl.BlockSpec((C, C), lambda b: (0, 0)),           # w_proj
        pl.BlockSpec((1, C), lambda b: (0, 0)),           # b_proj
    ]
    operands += [wq, wk, wv, wp, bp]

    kernel = functools.partial(
        _attention_rope_kernel,
        num_heads=num_heads, head_dim=D, scale=scale,
        has_mask=has_mask, compute_dtype=compute_dtype)

    grid_spec = pltpu.PrefetchScalarGridSpec(
        num_scalar_prefetch=0,
        grid=(B,),
        in_specs=in_specs,
        out_specs=pl.BlockSpec((1, N, C), lambda b: (b, 0, 0)),
    )

    return pl.pallas_call(
        kernel,
        out_shape=jax.ShapeDtypeStruct((B, N, C), x.dtype),
        grid_spec=grid_spec,
        compiler_params=pltpu.CompilerParams(
            dimension_semantics=("parallel",),
            vmem_limit_bytes=48 * 1024 * 1024),
    )(*operands)


def attention_rope_reference(x, freqs_cos, freqs_sin, w_qkv, w_proj, b_proj,
                             *, num_heads, mask=None):
    """Pure-JAX reference mirroring the PyTorch forward (for verification)."""
    B, N, C = x.shape
    D = C // num_heads
    scale = D ** (-0.5)

    qkv = x @ w_qkv                                     # (B, N, 3C)
    qkv = qkv.reshape(B, N, 3, num_heads, D).transpose(2, 0, 3, 1, 4)
    q, k, v = qkv[0], qkv[1], qkv[2]                    # (B, H, N, D)

    cos = freqs_cos[:, None, :, :]                      # (B, 1, N, D)
    sin = freqs_sin[:, None, :, :]

    def rotate_half(t):
        return jnp.concatenate([-t[..., D // 2:], t[..., :D // 2]], axis=-1)

    q = q * cos + rotate_half(q) * sin
    k = k * cos + rotate_half(k) * sin
    q = q * scale
    attn = jnp.einsum('bhnd,bhmd->bhnm', q, k).astype(jnp.float32)
    if mask is not None:
        attn = attn + mask[:, None, :, :]
    attn = jax.nn.softmax(attn, axis=-1).astype(x.dtype)
    out = jnp.einsum('bhnm,bhmd->bhnd', attn, v)
    out = out.transpose(0, 2, 1, 3).reshape(B, N, C)
    return out @ w_proj + b_proj


if __name__ == "__main__":
    B, N, dim, num_heads = 2, 8, 32, 4
    head_dim = dim // num_heads

    key = jax.random.PRNGKey(0)
    k1, k2, k3, k4 = jax.random.split(key, 4)

    x = jax.random.normal(k1, (B, N, dim), dtype=jnp.float32)

    # deterministic RoPE tables (valid cos/sin values)
    pos = jnp.arange(N, dtype=jnp.float32)[:, None]
    inv_freq = 1.0 / (10000.0 ** (jnp.arange(head_dim, dtype=jnp.float32) / head_dim))
    ang = pos * inv_freq[None, :]                        # (N, D)
    freqs_cos = jnp.broadcast_to(jnp.cos(ang), (B, N, head_dim))
    freqs_sin = jnp.broadcast_to(jnp.sin(ang), (B, N, head_dim))

    # parameters (qkv has no bias; proj has bias)
    w_qkv = 0.02 * jax.random.normal(k2, (dim, 3 * dim), dtype=jnp.float32)
    w_proj = 0.02 * jax.random.normal(k3, (dim, dim), dtype=jnp.float32)
    b_proj = 0.01 * jax.random.normal(k4, (dim,), dtype=jnp.float32)

    # 1) no-mask path (no zero mask materialized), faithful f32 compute.
    #    Tolerance accounts only for the approx (EUP) softmax reciprocal.
    out = attention_rope(x, freqs_cos, freqs_sin, w_qkv, w_proj, b_proj,
                         num_heads=num_heads, mask=None)
    out = jax.block_until_ready(out)
    ref = attention_rope_reference(x, freqs_cos, freqs_sin, w_qkv, w_proj, b_proj,
                                   num_heads=num_heads, mask=None)
    assert out.shape == (B, N, dim)
    assert jnp.allclose(out, ref, atol=1e-3, rtol=1e-3), "no-mask f32 mismatch"

    # 2) shared (1, N, N) additive causal mask (fetched once, not broadcast to B)
    causal = jnp.where(jnp.arange(N)[None, :] <= jnp.arange(N)[:, None],
                       0.0, -1e9).astype(jnp.float32)[None]      # (1, N, N)
    out_m = attention_rope(x, freqs_cos, freqs_sin, w_qkv, w_proj, b_proj,
                           num_heads=num_heads, mask=causal)
    out_m = jax.block_until_ready(out_m)
    ref_m = attention_rope_reference(x, freqs_cos, freqs_sin, w_qkv, w_proj,
                                     b_proj, num_heads=num_heads, mask=causal)
    assert jnp.allclose(out_m, ref_m, atol=1e-3, rtol=1e-3), "masked f32 mismatch"

    # 3) bf16 MXU fast path (bf16 dot inputs, f32 accumulate / f32 softmax)
    out_bf16 = attention_rope(x, freqs_cos, freqs_sin, w_qkv, w_proj, b_proj,
                              num_heads=num_heads, mask=None,
                              compute_dtype=jnp.bfloat16)
    out_bf16 = jax.block_until_ready(out_bf16)
    assert jnp.allclose(out_bf16.astype(jnp.float32), ref,
                        atol=3e-2, rtol=3e-2), "bf16 fast-path mismatch"

    print("KERNEL_OK")
</pallas_src>

<mosaic_0001>
module attributes {stable_mosaic.version = 11 : i64} {
  func.func @_attention_rope_kernel(%arg0: i32, %arg1: memref<1x8x32xf32, #tpu.memory_space<vmem>>, %arg2: memref<1x8x8xf32, #tpu.memory_space<vmem>>, %arg3: memref<1x8x8xf32, #tpu.memory_space<vmem>>, %arg4: memref<32x32xf32, #tpu.memory_space<vmem>>, %arg5: memref<32x32xf32, #tpu.memory_space<vmem>>, %arg6: memref<32x32xf32, #tpu.memory_space<vmem>>, %arg7: memref<32x32xf32, #tpu.memory_space<vmem>>, %arg8: memref<1x32xf32, #tpu.memory_space<vmem>>, %arg9: memref<1x8x32xf32, #tpu.memory_space<vmem>>) attributes {dimension_semantics = [#tpu.dimension_semantics<parallel>], iteration_bounds = array<i64: 2>, scalar_prefetch = 0 : i64, scratch_operands = 0 : i64, tpu.core_type = #tpu.core_type<tc>, window_params = [{transform_indices = @transform_0, window_bounds = array<i64: 1, 8, 32>}, {transform_indices = @transform_1, window_bounds = array<i64: 1, 8, 8>}, {transform_indices = @transform_2, window_bounds = array<i64: 1, 8, 8>}, {pipeline_mode = #tpu.pipeline_mode<synchronous>, transform_indices = @transform_3, window_bounds = array<i64: 32, 32>}, {pipeline_mode = #tpu.pipeline_mode<synchronous>, transform_indices = @transform_4, window_bounds = array<i64: 32, 32>}, {pipeline_mode = #tpu.pipeline_mode<synchronous>, transform_indices = @transform_5, window_bounds = array<i64: 32, 32>}, {pipeline_mode = #tpu.pipeline_mode<synchronous>, transform_indices = @transform_6, window_bounds = array<i64: 32, 32>}, {pipeline_mode = #tpu.pipeline_mode<synchronous>, transform_indices = @transform_7, window_bounds = array<i64: 1, 32>}, {transform_indices = @transform_8, window_bounds = array<i64: 1, 8, 32>}]} {
    %c0 = arith.constant 0 : index
    %c0_0 = arith.constant 0 : index
    %c0_1 = arith.constant 0 : index
    %0 = vector.load %arg1[%c0, %c0_0, %c0_1] : memref<1x8x32xf32, #tpu.memory_space<vmem>>, vector<1x8x32xf32>
    %1 = vector.shape_cast %0 : vector<1x8x32xf32> to vector<8x32xf32>
    %c0_2 = arith.constant 0 : index
    %c0_3 = arith.constant 0 : index
    %c0_4 = arith.constant 0 : index
    %2 = vector.load %arg2[%c0_2, %c0_3, %c0_4] : memref<1x8x8xf32, #tpu.memory_space<vmem>>, vector<1x8x8xf32>
    %3 = vector.shape_cast %2 : vector<1x8x8xf32> to vector<8x8xf32>
    %c0_5 = arith.constant 0 : index
    %c0_6 = arith.constant 0 : index
    %c0_7 = arith.constant 0 : index
    %4 = vector.load %arg3[%c0_5, %c0_6, %c0_7] : memref<1x8x8xf32, #tpu.memory_space<vmem>>, vector<1x8x8xf32>
    %5 = vector.shape_cast %4 : vector<1x8x8xf32> to vector<8x8xf32>
    %c0_8 = arith.constant 0 : index
    %c0_9 = arith.constant 0 : index
    %6 = vector.load %arg4[%c0_8, %c0_9] : memref<32x32xf32, #tpu.memory_space<vmem>>, vector<32x32xf32>
    %cst = arith.constant dense<0.000000e+00> : vector<8x32xf32>
    %7 = tpu.matmul %1, %6, %cst {dimension_numbers = #tpu.dot_dimension_numbers<[1], [0], [0], [1], [0, 0, 1, 1], [], []>} : vector<8x32xf32>, vector<32x32xf32>, vector<8x32xf32> -> vector<8x32xf32>
    %c0_10 = arith.constant 0 : index
    %c0_11 = arith.constant 0 : index
    %8 = vector.load %arg5[%c0_10, %c0_11] : memref<32x32xf32, #tpu.memory_space<vmem>>, vector<32x32xf32>
    %cst_12 = arith.constant dense<0.000000e+00> : vector<8x32xf32>
    %9 = tpu.matmul %1, %8, %cst_12 {dimension_numbers = #tpu.dot_dimension_numbers<[1], [0], [0], [1], [0, 0, 1, 1], [], []>} : vector<8x32xf32>, vector<32x32xf32>, vector<8x32xf32> -> vector<8x32xf32>
    %c0_13 = arith.constant 0 : index
    %c0_14 = arith.constant 0 : index
    %10 = vector.load %arg6[%c0_13, %c0_14] : memref<32x32xf32, #tpu.memory_space<vmem>>, vector<32x32xf32>
    %cst_15 = arith.constant dense<0.000000e+00> : vector<8x32xf32>
    %11 = tpu.matmul %1, %10, %cst_15 {dimension_numbers = #tpu.dot_dimension_numbers<[1], [0], [0], [1], [0, 0, 1, 1], [], []>} : vector<8x32xf32>, vector<32x32xf32>, vector<8x32xf32> -> vector<8x32xf32>
    %12 = vector.shape_cast %7 : vector<8x32xf32> to vector<8x4x8xf32>
    %13 = tpu.transpose %12, [1, 0, 2] : vector<8x4x8xf32> -> vector<4x8x8xf32>
    %14 = vector.shape_cast %9 : vector<8x32xf32> to vector<8x4x8xf32>
    %15 = tpu.transpose %14, [1, 0, 2] : vector<8x4x8xf32> -> vector<4x8x8xf32>
    %16 = vector.shape_cast %11 : vector<8x32xf32> to vector<8x4x8xf32>
    %17 = tpu.transpose %16, [1, 0, 2] : vector<8x4x8xf32> -> vector<4x8x8xf32>
    %18 = vector.shape_cast %3 : vector<8x8xf32> to vector<1x8x8xf32>
    %19 = vector.shape_cast %5 : vector<8x8xf32> to vector<1x8x8xf32>
    %20 = vector.broadcast %18 : vector<1x8x8xf32> to vector<4x8x8xf32>
    %21 = arith.mulf %13, %20 : vector<4x8x8xf32>
    %c4_i32 = arith.constant 4 : i32
    %22 = tpu.dynamic_rotate %13 by %c4_i32 dim 2 : vector<4x8x8xf32>, i32 -> vector<4x8x8xf32>
    %23 = vector.broadcast %19 : vector<1x8x8xf32> to vector<4x8x8xf32>
    %24 = arith.mulf %22, %23 : vector<4x8x8xf32>
    %25 = arith.addf %21, %24 : vector<4x8x8xf32>
    %26 = vector.broadcast %18 : vector<1x8x8xf32> to vector<4x8x8xf32>
    %27 = arith.mulf %15, %26 : vector<4x8x8xf32>
    %c4_i32_16 = arith.constant 4 : i32
    %28 = tpu.dynamic_rotate %15 by %c4_i32_16 dim 2 : vector<4x8x8xf32>, i32 -> vector<4x8x8xf32>
    %29 = vector.broadcast %19 : vector<1x8x8xf32> to vector<4x8x8xf32>
    %30 = arith.mulf %28, %29 : vector<4x8x8xf32>
    %31 = arith.addf %27, %30 : vector<4x8x8xf32>
    %cst_17 = arith.constant 0.353553385 : f32
    %32 = vector.broadcast %cst_17 : f32 to vector<4x8x8xf32>
    %33 = arith.mulf %25, %32 : vector<4x8x8xf32>
    "tpu.trace_start"() <{level = 10 : i32, message = "hnd,hmd->hnm"}> : () -> ()
    %cst_18 = arith.constant dense<0.000000e+00> : vector<4x8x8xf32>
    %34 = tpu.matmul %33, %31, %cst_18 {dimension_numbers = #tpu.dot_dimension_numbers<[2], [2], [1], [1], [0, 0, 0, 1, 1, 1], [0], [0]>} : vector<4x8x8xf32>, vector<4x8x8xf32>, vector<4x8x8xf32> -> vector<4x8x8xf32>
    "tpu.trace_stop"() : () -> ()
    %cst_19 = arith.constant dense<0xFF800000> : vector<4x8xf32>
    %35 = vector.multi_reduction <maximumf>, %34, %cst_19 [2] : vector<4x8x8xf32> to vector<4x8xf32>
    %36 = vector.shape_cast %35 : vector<4x8xf32> to vector<4x8x1xf32>
    %37 = vector.broadcast %36 : vector<4x8x1xf32> to vector<4x8x8xf32>
    %38 = arith.subf %34, %37 : vector<4x8x8xf32>
    %39 = math.exp %38 : vector<4x8x8xf32>
    %cst_20 = arith.constant dense<0.000000e+00> : vector<4x8xf32>
    %40 = vector.multi_reduction <add>, %39, %cst_20 [2] : vector<4x8x8xf32> to vector<4x8xf32>
    %41 = vector.shape_cast %40 : vector<4x8xf32> to vector<4x8x1xf32>
    %42 = tpu.reciprocal %41 {approx = true} : vector<4x8x1xf32> -> vector<4x8x1xf32>
    %43 = vector.broadcast %42 : vector<4x8x1xf32> to vector<4x8x8xf32>
    %44 = arith.mulf %39, %43 : vector<4x8x8xf32>
    "tpu.trace_start"() <{level = 10 : i32, message = "hnm,hmd->hnd"}> : () -> ()
    %cst_21 = arith.constant dense<0.000000e+00> : vector<4x8x8xf32>
    %45 = tpu.matmul %44, %17, %cst_21 {dimension_numbers = #tpu.dot_dimension_numbers<[2], [1], [1], [2], [0, 0, 0, 1, 1, 2], [0], [0]>} : vector<4x8x8xf32>, vector<4x8x8xf32>, vector<4x8x8xf32> -> vector<4x8x8xf32>
    "tpu.trace_stop"() : () -> ()
    %46 = tpu.transpose %45, [1, 0, 2] : vector<4x8x8xf32> -> vector<8x4x8xf32>
    %47 = vector.shape_cast %46 : vector<8x4x8xf32> to vector<8x32xf32>
    %c0_22 = arith.constant 0 : index
    %c0_23 = arith.constant 0 : index
    %48 = vector.load %arg7[%c0_22, %c0_23] : memref<32x32xf32, #tpu.memory_space<vmem>>, vector<32x32xf32>
    %cst_24 = arith.constant dense<0.000000e+00> : vector<8x32xf32>
    %49 = tpu.matmul %47, %48, %cst_24 {dimension_numbers = #tpu.dot_dimension_numbers<[1], [0], [0], [1], [0, 0, 1, 1], [], []>} : vector<8x32xf32>, vector<32x32xf32>, vector<8x32xf32> -> vector<8x32xf32>
    %c0_25 = arith.constant 0 : index
    %c0_26 = arith.constant 0 : index
    %50 = vector.load %arg8[%c0_25, %c0_26] : memref<1x32xf32, #tpu.memory_space<vmem>>, vector<1x32xf32>
    %51 = vector.broadcast %50 : vector<1x32xf32> to vector<8x32xf32>
    %52 = arith.addf %49, %51 : vector<8x32xf32>
    %c0_27 = arith.constant 0 : index
    %c0_28 = arith.constant 0 : index
    %c0_29 = arith.constant 0 : index
    %53 = vector.load %arg9[%c0_27, %c0_28, %c0_29] : memref<1x8x32xf32, #tpu.memory_space<vmem>>, vector<1x8x32xf32>
    %54 = vector.shape_cast %53 : vector<1x8x32xf32> to vector<8x32xf32>
    %55 = vector.shape_cast %52 : vector<8x32xf32> to vector<1x8x32xf32>
    tpu.vector_store %arg9[%c0_27, %c0_28, %c0_29], %55 {strides = array<i32>} : memref<1x8x32xf32, #tpu.memory_space<vmem>>, vector<1x8x32xf32>,
    return
  }
  func.func @transform_0(%arg0: i32) -> (i32, i32, i32) {
    %c0_i32 = arith.constant 0 : i32
    %c0_i32_0 = arith.constant 0 : i32
    %c0_i32_1 = arith.constant 0 : i32
    return %arg0, %c0_i32, %c0_i32_0 : i32, i32, i32
  }
  func.func @transform_1(%arg0: i32) -> (i32, i32, i32) {
    %c0_i32 = arith.constant 0 : i32
    %c0_i32_0 = arith.constant 0 : i32
    %c0_i32_1 = arith.constant 0 : i32
    return %arg0, %c0_i32, %c0_i32_0 : i32, i32, i32
  }
  func.func @transform_2(%arg0: i32) -> (i32, i32, i32) {
    %c0_i32 = arith.constant 0 : i32
    %c0_i32_0 = arith.constant 0 : i32
    %c0_i32_1 = arith.constant 0 : i32
    return %arg0, %c0_i32, %c0_i32_0 : i32, i32, i32
  }
  func.func @transform_3(%arg0: i32) -> (i32, i32) {
    %c0_i32 = arith.constant 0 : i32
    %c0_i32_0 = arith.constant 0 : i32
    %c0_i32_1 = arith.constant 0 : i32
    return %c0_i32, %c0_i32_0 : i32, i32
  }
  func.func @transform_4(%arg0: i32) -> (i32, i32) {
    %c0_i32 = arith.constant 0 : i32
    %c0_i32_0 = arith.constant 0 : i32
    %c0_i32_1 = arith.constant 0 : i32
    return %c0_i32, %c0_i32_0 : i32, i32
  }
  func.func @transform_5(%arg0: i32) -> (i32, i32) {
    %c0_i32 = arith.constant 0 : i32
    %c0_i32_0 = arith.constant 0 : i32
    %c0_i32_1 = arith.constant 0 : i32
    return %c0_i32, %c0_i32_0 : i32, i32
  }
  func.func @transform_6(%arg0: i32) -> (i32, i32) {
    %c0_i32 = arith.constant 0 : i32
    %c0_i32_0 = arith.constant 0 : i32
    %c0_i32_1 = arith.constant 0 : i32
    return %c0_i32, %c0_i32_0 : i32, i32
  }
  func.func @transform_7(%arg0: i32) -> (i32, i32) {
    %c0_i32 = arith.constant 0 : i32
    %c0_i32_0 = arith.constant 0 : i32
    %c0_i32_1 = arith.constant 0 : i32
    return %c0_i32, %c0_i32_0 : i32, i32
  }
  func.func @transform_8(%arg0: i32) -> (i32, i32, i32) {
    %c0_i32 = arith.constant 0 : i32
    %c0_i32_0 = arith.constant 0 : i32
    %c0_i32_1 = arith.constant 0 : i32
    return %arg0, %c0_i32, %c0_i32_0 : i32, i32, i32
  }
}

</mosaic_0001>

<llo_original>
// kernel: tpu_custom_call.1
$region0: #{tpu_custom_call.1}
  #allocation0 [shape = 'u32[]', space=smem, size = 0x4, offset = 0x4, fixed_abs, tag = 'smem constant byte address 0x4 - core index']
  #allocation1 [shape = 'u32[72,128]{1,0:T(1,128)}', space=vmem, size = 0x9000, scoped, tag = 'internal scratch']
  %s0 = inlined_call_operand.hbm [shape: f32[2,8,32], index: 0, kind: input, shape index: {}]
  %s1 = inlined_call_operand.hbm [shape: f32[2,8,8], index: 1, kind: input, shape index: {}]
  %s2 = inlined_call_operand.hbm [shape: f32[2,8,8], index: 2, kind: input, shape index: {}]
  %s3 = inlined_call_operand.hbm [shape: f32[32,32], index: 3, kind: input, shape index: {}]
  %s4 = inlined_call_operand.hbm [shape: f32[32,32], index: 4, kind: input, shape index: {}]
  %s5 = inlined_call_operand.hbm [shape: f32[32,32], index: 5, kind: input, shape index: {}]
  %s6 = inlined_call_operand.hbm [shape: f32[32,32], index: 6, kind: input, shape index: {}]
  %s7 = inlined_call_operand.vmem [shape: f32[1,32], index: 7, kind: input, shape index: {}]
  %s8 = inlined_call_operand.hbm [shape: f32[2,8,32], index: 8, kind: output, shape index: {}]
  %s9 = sld [smem:[#allocation0]]
  $region93: #{tpu_custom_call.1} parent=0
    _
  %s11 = ssub.s32 1, %s9
  %s12 = scalar_select 0, %s11, %s9
  $region1: #{tpu_custom_call.1} parent=0
    #allocation2 [shape = 'u8[8192]{0}', space=vmem, size = 0x2000, scoped, tag = 'input window, operand 0']
    #allocation3 [shape = 's32[2]{0}', space=sflag, size = 0x8, scoped, tag = 'scoped memory for tpu_custom_call.1']
    #allocation4 [shape = 's32[2]{0}', space=sflag, size = 0x8, scoped, tag = 'scoped memory for tpu_custom_call.1']
    #allocation5 [shape = 'u8[8192]{0}', space=vmem, size = 0x2000, scoped, tag = 'input window, operand 1']
    #allocation6 [shape = 's32[2]{0}', space=sflag, size = 0x8, scoped, tag = 'scoped memory for tpu_custom_call.1']
    #allocation7 [shape = 'u8[8192]{0}', space=vmem, size = 0x2000, scoped, tag = 'input window, operand 2']
    #allocation8 [shape = 'u8[16384]{0}', space=vmem, size = 0x4000, scoped, tag = 'input window, operand 3, single buffered']
    #allocation9 [shape = 's32[1]{0}', space=sflag, size = 0x4, scoped, tag = 'scoped memory for tpu_custom_call.1']
    #allocation10 [shape = 'u8[16384]{0}', space=vmem, size = 0x4000, scoped, tag = 'input window, operand 4, single buffered']
    #allocation11 [shape = 'u8[16384]{0}', space=vmem, size = 0x4000, scoped, tag = 'input window, operand 5, single buffered']
    #allocation12 [shape = 's32[1]{0}', space=sflag, size = 0x4, scoped, tag = 'scoped memory for tpu_custom_call.1']
    #allocation13 [shape = 'u8[16384]{0}', space=vmem, size = 0x4000, scoped, tag = 'input window, operand 6, single buffered']
    #allocation14 [shape = 'u8[8192]{0}', space=vmem, size = 0x2000, scoped, tag = 'output window, operand 0']
    %13 = vsyncpa [#allocation3], 0
    %s14 = scalar_lea.sflag [#allocation3], 1
    %15 = vsyncpa %s14, 0
    %16 = vsyncpa [#allocation6], 0
    %s17 = scalar_lea.sflag [#allocation6], 1
    %18 = vsyncpa %s17, 0
    %19 = vsyncpa [#allocation9], 0
    %20 = vsyncpa [#allocation12], 0
    %21 = vsyncpa [#allocation4], 0
    %s22 = scalar_lea.sflag [#allocation4], 1
    %23 = vsyncpa %s22, 0
    loop: start=0, step=1, limit=4
    $region2: #{tpu_custom_call.1} parent=1 // loop_pre_header
      _
    $region3: #{tpu_custom_call.1} parent=1 // loop_header
      %s25 = sphi 0, %s29
      %p26 = scmp.ge.s32.totalorder %s25, 4
      %s35 = sphi 0, %s37
      %s38 = sphi 0, %s35
      %s39 = sphi 0, %s38
      %s55 = sphi 0, %s39
      %s61 = sphi 0, %s63
      %s64 = sphi 0, %s61
      %s65 = sphi 0, %s64
      %s81 = sphi 0, %s65
      %s87 = sphi 0, %s89
      %s90 = sphi 0, %s87
      %s91 = sphi 0, %s90
      %s107 = sphi 0, %s91
      %s111 = sphi 0, %s111
      %s113 = sphi 0, %s111
      %s114 = sphi 0, %s113
      %s128 = sphi 0, %s114
      %s132 = sphi 0, %s132
      %s134 = sphi 0, %s132
      %s135 = sphi 0, %s134
      %s149 = sphi 0, %s135
      %s153 = sphi 0, %s153
      %s155 = sphi 0, %s153
      %s156 = sphi 0, %s155
      %s170 = sphi 0, %s156
      %s174 = sphi 0, %s174
      %s176 = sphi 0, %s174
      %s177 = sphi 0, %s176
      %s191 = sphi 0, %s177
      %s195 = sphi 0, %s195
      %s197 = sphi 0, %s195
      %s198 = sphi 0, %s197
      %s212 = sphi 0, %s198
      %s218 = sphi 0, %s220
      %s221 = sphi 0, %s218
      %s222 = sphi 0, %s221
      %s238 = sphi 0, %s222
    $region4: #{tpu_custom_call.1} parent=1 // loop_header_branch
      %28 = sbr.rel (%p26) target = $region8
    $region5: #{tpu_custom_call.1} parent=1 // loop_body
      %s30 = ssub.s32 %s25, 1
      %s31 = ssub.s32 %s25, 2
      %s32 = sadd.s32 %s25, 1
      %s33 = ssub.s32 %s25, %s32
      %p34 = scmp.eq.s32.totalorder %s33, 0
      %s36 = sadd.s32 %s35, 1
      %s37 = scalar_select %p34, %s35, %s36
      %p40 = pneg %p34
      %p41 = scmp.eq.s32.totalorder %s25, 1
      %p42 = por %p40, %p41
      %p43 = scmp.ne.s32.totalorder %s35, %s38
      %p44 = scmp.eq.s32.totalorder %s25, 0
      %p45 = por %p43, %p44
      %p46 = scmp.ne.s32.totalorder %s35, %s38
      %p47 = scmp.eq.s32.totalorder %s30, 1
      %p48 = por %p46, %p47
      %p49 = scmp.ne.s32.totalorder %s38, %s39
      %p50 = scmp.eq.s32.totalorder %s30, 0
      %p51 = por %p49, %p50
      %p52 = scmp.ne.s32.totalorder %s38, %s39
      %p53 = scmp.eq.s32.totalorder %s31, 1
      %p54 = por %p52, %p53
      %p56 = scmp.ne.s32.totalorder %s39, %s55
      %p57 = scmp.eq.s32.totalorder %s31, 0
      %p58 = por %p56, %p57
      %s59 = ssub.s32 %s25, %s32
      %p60 = scmp.eq.s32.totalorder %s59, 0
      %s62 = sadd.s32 %s61, 1
      %s63 = scalar_select %p60, %s61, %s62
      %p66 = pneg %p60
      %p67 = scmp.eq.s32.totalorder %s25, 1
      %p68 = por %p66, %p67
      %p69 = scmp.ne.s32.totalorder %s61, %s64
      %p70 = scmp.eq.s32.totalorder %s25, 0
      %p71 = por %p69, %p70
      %p72 = scmp.ne.s32.totalorder %s61, %s64
      %p73 = scmp.eq.s32.totalorder %s30, 1
      %p74 = por %p72, %p73
      %p75 = scmp.ne.s32.totalorder %s64, %s65
      %p76 = scmp.eq.s32.totalorder %s30, 0
      %p77 = por %p75, %p76
      %p78 = scmp.ne.s32.totalorder %s64, %s65
      %p79 = scmp.eq.s32.totalorder %s31, 1
      %p80 = por %p78, %p79
      %p82 = scmp.ne.s32.totalorder %s65, %s81
      %p83 = scmp.eq.s32.totalorder %s31, 0
      %p84 = por %p82, %p83
      %s85 = ssub.s32 %s25, %s32
      %p86 = scmp.eq.s32.totalorder %s85, 0
      %s88 = sadd.s32 %s87, 1
      %s89 = scalar_select %p86, %s87, %s88
      %p92 = pneg %p86
      %p93 = scmp.eq.s32.totalorder %s25, 1
      %p94 = por %p92, %p93
      %p95 = scmp.ne.s32.totalorder %s87, %s90
      %p96 = scmp.eq.s32.totalorder %s25, 0
      %p97 = por %p95, %p96
      %p98 = scmp.ne.s32.totalorder %s87, %s90
      %p99 = scmp.eq.s32.totalorder %s30, 1
      %p100 = por %p98, %p99
      %p101 = scmp.ne.s32.totalorder %s90, %s91
      %p102 = scmp.eq.s32.totalorder %s30, 0
      %p103 = por %p101, %p102
      %p104 = scmp.ne.s32.totalorder %s90, %s91
      %p105 = scmp.eq.s32.totalorder %s31, 1
      %p106 = por %p104, %p105
      %p108 = scmp.ne.s32.totalorder %s91, %s107
      %p109 = scmp.eq.s32.totalorder %s31, 0
      %p110 = por %p108, %p109
      %s112 = sadd.s32 %s111, 1
      %p115 = scmp.eq.s32.totalorder %s25, 1
      %p116 = scmp.ne.s32.totalorder %s111, %s113
      %p117 = scmp.eq.s32.totalorder %s25, 0
      %p118 = por %p116, %p117
      %p119 = scmp.ne.s32.totalorder %s111, %s113
      %p120 = scmp.eq.s32.totalorder %s30, 1
      %p121 = por %p119, %p120
      %p122 = scmp.ne.s32.totalorder %s113, %s114
      %p123 = scmp.eq.s32.totalorder %s30, 0
      %p124 = por %p122, %p123
      %p125 = scmp.ne.s32.totalorder %s113, %s114
      %p126 = scmp.eq.s32.totalorder %s31, 1
      %p127 = por %p125, %p126
      %p129 = scmp.ne.s32.totalorder %s114, %s128
      %p130 = scmp.eq.s32.totalorder %s31, 0
      %p131 = por %p129, %p130
      %s133 = sadd.s32 %s132, 1
      %p136 = scmp.eq.s32.totalorder %s25, 1
      %p137 = scmp.ne.s32.totalorder %s132, %s134
      %p138 = scmp.eq.s32.totalorder %s25, 0
      %p139 = por %p137, %p138
      %p140 = scmp.ne.s32.totalorder %s132, %s134
      %p141 = scmp.eq.s32.totalorder %s30, 1
      %p142 = por %p140, %p141
      %p143 = scmp.ne.s32.totalorder %s134, %s135
      %p144 = scmp.eq.s32.totalorder %s30, 0
      %p145 = por %p143, %p144
      %p146 = scmp.ne.s32.totalorder %s134, %s135
      %p147 = scmp.eq.s32.totalorder %s31, 1
      %p148 = por %p146, %p147
      %p150 = scmp.ne.s32.totalorder %s135, %s149
      %p151 = scmp.eq.s32.totalorder %s31, 0
      %p152 = por %p150, %p151
      %s154 = sadd.s32 %s153, 1
      %p157 = scmp.eq.s32.totalorder %s25, 1
      %p158 = scmp.ne.s32.totalorder %s153, %s155
      %p159 = scmp.eq.s32.totalorder %s25, 0
      %p160 = por %p158, %p159
      %p161 = scmp.ne.s32.totalorder %s153, %s155
      %p162 = scmp.eq.s32.totalorder %s30, 1
      %p163 = por %p161, %p162
      %p164 = scmp.ne.s32.totalorder %s155, %s156
      %p165 = scmp.eq.s32.totalorder %s30, 0
      %p166 = por %p164, %p165
      %p167 = scmp.ne.s32.totalorder %s155, %s156
      %p168 = scmp.eq.s32.totalorder %s31, 1
      %p169 = por %p167, %p168
      %p171 = scmp.ne.s32.totalorder %s156, %s170
      %p172 = scmp.eq.s32.totalorder %s31, 0
      %p173 = por %p171, %p172
      %s175 = sadd.s32 %s174, 1
      %p178 = scmp.eq.s32.totalorder %s25, 1
      %p179 = scmp.ne.s32.totalorder %s174, %s176
      %p180 = scmp.eq.s32.totalorder %s25, 0
      %p181 = por %p179, %p180
      %p182 = scmp.ne.s32.totalorder %s174, %s176
      %p183 = scmp.eq.s32.totalorder %s30, 1
      %p184 = por %p182, %p183
      %p185 = scmp.ne.s32.totalorder %s176, %s177
      %p186 = scmp.eq.s32.totalorder %s30, 0
      %p187 = por %p185, %p186
      %p188 = scmp.ne.s32.totalorder %s176, %s177
      %p189 = scmp.eq.s32.totalorder %s31, 1
      %p190 = por %p188, %p189
      %p192 = scmp.ne.s32.totalorder %s177, %s191
      %p193 = scmp.eq.s32.totalorder %s31, 0
      %p194 = por %p192, %p193
      %s196 = sadd.s32 %s195, 1
      %p199 = scmp.eq.s32.totalorder %s25, 1
      %p200 = scmp.ne.s32.totalorder %s195, %s197
      %p201 = scmp.eq.s32.totalorder %s25, 0
      %p202 = por %p200, %p201
      %p203 = scmp.ne.s32.totalorder %s195, %s197
      %p204 = scmp.eq.s32.totalorder %s30, 1
      %p205 = por %p203, %p204
      %p206 = scmp.ne.s32.totalorder %s197, %s198
      %p207 = scmp.eq.s32.totalorder %s30, 0
      %p208 = por %p206, %p207
      %p209 = scmp.ne.s32.totalorder %s197, %s198
      %p210 = scmp.eq.s32.totalorder %s31, 1
      %p211 = por %p209, %p210
      %p213 = scmp.ne.s32.totalorder %s198, %s212
      %p214 = scmp.eq.s32.totalorder %s31, 0
      %p215 = por %p213, %p214
      %s216 = ssub.s32 %s25, %s32
      %p217 = scmp.eq.s32.totalorder %s216, 0
      %s219 = sadd.s32 %s218, 1
      %s220 = scalar_select %p217, %s218, %s219
      %p223 = pneg %p217
      %p224 = scmp.eq.s32.totalorder %s25, 1
      %p225 = por %p223, %p224
      %p226 = scmp.ne.s32.totalorder %s218, %s221
      %p227 = scmp.eq.s32.totalorder %s25, 0
      %p228 = por %p226, %p227
      %p229 = scmp.ne.s32.totalorder %s218, %s221
      %p230 = scmp.eq.s32.totalorder %s30, 1
      %p231 = por %p229, %p230
      %p232 = scmp.ne.s32.totalorder %s221, %s222
      %p233 = scmp.eq.s32.totalorder %s30, 0
      %p234 = por %p232, %p233
      %p235 = scmp.ne.s32.totalorder %s221, %s222
      %p236 = scmp.eq.s32.totalorder %s31, 1
      %p237 = por %p235, %p236
      %p239 = scmp.ne.s32.totalorder %s222, %s238
      %p240 = scmp.eq.s32.totalorder %s31, 0
      %p241 = por %p239, %p240
      %p242 = scmp.le.s32.totalorder 1, %s25
      %p243 = scmp.lt.s32.totalorder %s25, 3
      %p244 = pnand %p242, %p243
      %p245 = pneg %p244
      // Predicated region
      $region9: #{tpu_custom_call.1} parent=5 // pred_check
        _
      $region10: #{tpu_custom_call.1} parent=5 // pred_check_branch
        %247 = sbr.rel (%p244) target = $region12
      $region11: #{tpu_custom_call.1} parent=5 // pred_region
        %s248 = ssub.s32 %s25, 1
        // Predicated region
        $region13: #{tpu_custom_call.1} parent=11 // pred_check
          %p249 = pneg %p124
        $region14: #{tpu_custom_call.1} parent=11 // pred_check_branch
          %251 = sbr.rel (%p249) target = $region16
        $region15: #{tpu_custom_call.1} parent=11 // pred_region
          %253 = vsyncadd [#allocation9], 0
          %s254 = sshll.u32 %s3, 4
          %s255 = int_to_ptr.hbm [resolvable:$true] %s254
          %s256 = sshll.u32 [#allocation8], 4
          %s257 = int_to_ptr.vmem [resolvable:$true] %s256
          %262 = dma.hbm_to_vmem [thread:$0]  %s255, 512, %s257, [#allocation9], 128, 128, 8
        $region16: #{tpu_custom_call.1} parent=11 // pred_fallthru
          _
        // Predicated region
        $region17: #{tpu_custom_call.1} parent=11 // pred_check
          %p263 = pneg %p145
        $region18: #{tpu_custom_call.1} parent=11 // pred_check_branch
          %265 = sbr.rel (%p263) target = $region20
        $region19: #{tpu_custom_call.1} parent=11 // pred_region
          %267 = vsyncadd [#allocation9], 0
          %s268 = sshll.u32 %s4, 4
          %s269 = int_to_ptr.hbm [resolvable:$true] %s268
          %s270 = sshll.u32 [#allocation10], 4
          %s271 = int_to_ptr.vmem [resolvable:$true] %s270
          %276 = dma.hbm_to_vmem [thread:$0]  %s269, 512, %s271, [#allocation9], 128, 128, 8
        $region20: #{tpu_custom_call.1} parent=11 // pred_fallthru
          _
        // Predicated region
        $region21: #{tpu_custom_call.1} parent=11 // pred_check
          %p277 = pneg %p166
        $region22: #{tpu_custom_call.1} parent=11 // pred_check_branch
          %279 = sbr.rel (%p277) target = $region24
        $region23: #{tpu_custom_call.1} parent=11 // pred_region
          %281 = vsyncadd [#allocation12], 0
          %s282 = sshll.u32 %s5, 4
          %s283 = int_to_ptr.hbm [resolvable:$true] %s282
          %s284 = sshll.u32 [#allocation11], 4
          %s285 = int_to_ptr.vmem [resolvable:$true] %s284
          %290 = dma.hbm_to_vmem [thread:$0]  %s283, 512, %s285, [#allocation12], 128, 128, 8
        $region24: #{tpu_custom_call.1} parent=11 // pred_fallthru
          _
        // Predicated region
        $region25: #{tpu_custom_call.1} parent=11 // pred_check
          %p291 = pneg %p187
        $region26: #{tpu_custom_call.1} parent=11 // pred_check_branch
          %293 = sbr.rel (%p291) target = $region28
        $region27: #{tpu_custom_call.1} parent=11 // pred_region
          %295 = vsyncadd [#allocation12], 0
          %s296 = sshll.u32 %s6, 4
          %s297 = int_to_ptr.hbm [resolvable:$true] %s296
          %s298 = sshll.u32 [#allocation13], 4
          %s299 = int_to_ptr.vmem [resolvable:$true] %s298
          %304 = dma.hbm_to_vmem [thread:$0]  %s297, 512, %s299, [#allocation12], 128, 128, 8
        $region28: #{tpu_custom_call.1} parent=11 // pred_fallthru
          _
        // Predicated region
        $region29: #{tpu_custom_call.1} parent=11 // pred_check
          %p305 = pneg %p208
        $region30: #{tpu_custom_call.1} parent=11 // pred_check_branch
          %307 = sbr.rel (%p305) target = $region32
        $region31: #{tpu_custom_call.1} parent=11 // pred_region
          _
        $region32: #{tpu_custom_call.1} parent=11 // pred_fallthru
          _
      $region12: #{tpu_custom_call.1} parent=5 // pred_fallthru
        _
      %p308 = scmp.lt.s32.totalorder %s25, 2
      // Predicated region
      $region33: #{tpu_custom_call.1} parent=5 // pred_check
        %p309 = pneg %p308
      $region34: #{tpu_custom_call.1} parent=5 // pred_check_branch
        %311 = sbr.rel (%p309) target = $region36
      $region35: #{tpu_custom_call.1} parent=5 // pred_region
        // Predicated region
        $region37: #{tpu_custom_call.1} parent=35 // pred_check
          %p312 = pneg %p45
        $region38: #{tpu_custom_call.1} parent=35 // pred_check_branch
          %314 = sbr.rel (%p312) target = $region40
        $region39: #{tpu_custom_call.1} parent=35 // pred_region
          %s315 = sand.u32 %s35, 1
          %s316 = scalar_lea.sflag [#allocation3], %s315
          %s317 = sand.u32 %s35, 1
          %s318 = smul.addr %s317, 8
          %s319 = scalar_lea.vmem [#allocation2], %s318
          %321 = vsyncadd %s316, 0
          %s322 = smul.addr %s25, 8
          %s323 = scalar_lea.hbm %s0, %s322
          %s325 = sshll.u32 %s323, 4
          %s326 = int_to_ptr.hbm [resolvable:$true] %s325
          %s327 = sshll.u32 %s319, 4
          %s328 = int_to_ptr.vmem [resolvable:$true] %s327
          %330 = dma.hbm_to_vmem [thread:$0]  %s326, 128, %s328, %s316
        $region40: #{tpu_custom_call.1} parent=35 // pred_fallthru
          _
        // Predicated region
        $region41: #{tpu_custom_call.1} parent=35 // pred_check
          %p331 = pneg %p71
        $region42: #{tpu_custom_call.1} parent=35 // pred_check_branch
          %333 = sbr.rel (%p331) target = $region44
        $region43: #{tpu_custom_call.1} parent=35 // pred_region
          %s334 = sand.u32 %s25, 1
          %s335 = scalar_lea.sflag [#allocation6], %s334
          %s336 = sand.u32 %s61, 1
          %s337 = smul.addr %s336, 8
          %s338 = scalar_lea.vmem [#allocation5], %s337
          %340 = vsyncadd %s335, 0
          %s341 = smul.addr %s25, 8
          %s342 = scalar_lea.hbm %s1, %s341
          %s344 = sshll.u32 %s342, 4
          %s345 = int_to_ptr.hbm [resolvable:$true] %s344
          %s346 = sshll.u32 %s338, 4
          %s347 = int_to_ptr.vmem [resolvable:$true] %s346
          %349 = dma.hbm_to_vmem [thread:$0]  %s345, 128, %s347, %s335
        $region44: #{tpu_custom_call.1} parent=35 // pred_fallthru
          _
        // Predicated region
        $region45: #{tpu_custom_call.1} parent=35 // pred_check
          %p350 = pneg %p97
        $region46: #{tpu_custom_call.1} parent=35 // pred_check_branch
          %352 = sbr.rel (%p350) target = $region48
        $region47: #{tpu_custom_call.1} parent=35 // pred_region
          %s353 = sand.u32 %s25, 1
          %s354 = scalar_lea.sflag [#allocation6], %s353
          %s355 = sand.u32 %s87, 1
          %s356 = smul.addr %s355, 8
          %s357 = scalar_lea.vmem [#allocation7], %s356
          %359 = vsyncadd %s354, 0
          %s360 = smul.addr %s25, 8
          %s361 = scalar_lea.hbm %s2, %s360
          %s363 = sshll.u32 %s361, 4
          %s364 = int_to_ptr.hbm [resolvable:$true] %s363
          %s365 = sshll.u32 %s357, 4
          %s366 = int_to_ptr.vmem [resolvable:$true] %s365
          %368 = dma.hbm_to_vmem [thread:$0]  %s364, 128, %s366, %s354
        $region48: #{tpu_custom_call.1} parent=35 // pred_fallthru
          _
      $region36: #{tpu_custom_call.1} parent=5 // pred_fallthru
        _
      %p369 = scmp.le.s32.totalorder 1, %s25
      %p370 = scmp.lt.s32.totalorder %s25, 3
      %p371 = pnand %p369, %p370
      %p372 = pneg %p371
      // Predicated region
      $region49: #{tpu_custom_call.1} parent=5 // pred_check
        _
      $region50: #{tpu_custom_call.1} parent=5 // pred_check_branch
        %374 = sbr.rel (%p371) target = $region52
      $region51: #{tpu_custom_call.1} parent=5 // pred_region
        %s375 = ssub.s32 %s25, 1
        %s376 = sand.u32 %s38, 1
        %s377 = scalar_lea.sflag [#allocation3], %s376
        %s378 = sand.u32 %s38, 1
        %s379 = smul.addr %s378, 8
        %s380 = scalar_lea.vmem [#allocation2], %s379
        // Predicated region
        $region53: #{tpu_custom_call.1} parent=51 // pred_check
          %p381 = pneg %p51
        $region54: #{tpu_custom_call.1} parent=51 // pred_check_branch
          %383 = sbr.rel (%p381) target = $region56
        $region55: #{tpu_custom_call.1} parent=51 // pred_region
          %385 = dma.done %s377, 128
        $region56: #{tpu_custom_call.1} parent=51 // pred_fallthru
          _
        %s386 = sand.u32 %s30, 1
        %s387 = scalar_lea.sflag [#allocation6], %s386
        %s388 = sand.u32 %s64, 1
        %s389 = smul.addr %s388, 8
        %s390 = scalar_lea.vmem [#allocation5], %s389
        // Predicated region
        $region57: #{tpu_custom_call.1} parent=51 // pred_check
          %p391 = pneg %p77
        $region58: #{tpu_custom_call.1} parent=51 // pred_check_branch
          %393 = sbr.rel (%p391) target = $region60
        $region59: #{tpu_custom_call.1} parent=51 // pred_region
          %395 = dma.done %s387, 128
        $region60: #{tpu_custom_call.1} parent=51 // pred_fallthru
          _
        %s396 = sand.u32 %s30, 1
        %s397 = scalar_lea.sflag [#allocation6], %s396
        %s398 = sand.u32 %s90, 1
        %s399 = smul.addr %s398, 8
        %s400 = scalar_lea.vmem [#allocation7], %s399
        // Predicated region
        $region61: #{tpu_custom_call.1} parent=51 // pred_check
          %p401 = pneg %p103
        $region62: #{tpu_custom_call.1} parent=51 // pred_check_branch
          %403 = sbr.rel (%p401) target = $region64
        $region63: #{tpu_custom_call.1} parent=51 // pred_region
          %405 = dma.done %s397, 128
        $region64: #{tpu_custom_call.1} parent=51 // pred_fallthru
          _
        // Predicated region
        $region65: #{tpu_custom_call.1} parent=51 // pred_check
          %p406 = pneg %p124
        $region66: #{tpu_custom_call.1} parent=51 // pred_check_branch
          %408 = sbr.rel (%p406) target = $region68
        $region67: #{tpu_custom_call.1} parent=51 // pred_region
          %410 = dma.done [#allocation9], 512
        $region68: #{tpu_custom_call.1} parent=51 // pred_fallthru
          _
        // Predicated region
        $region69: #{tpu_custom_call.1} parent=51 // pred_check
          %p411 = pneg %p145
        $region70: #{tpu_custom_call.1} parent=51 // pred_check_branch
          %413 = sbr.rel (%p411) target = $region72
        $region71: #{tpu_custom_call.1} parent=51 // pred_region
          %415 = dma.done [#allocation9], 512
        $region72: #{tpu_custom_call.1} parent=51 // pred_fallthru
          _
        // Predicated region
        $region73: #{tpu_custom_call.1} parent=51 // pred_check
          %p416 = pneg %p166
        $region74: #{tpu_custom_call.1} parent=51 // pred_check_branch
          %418 = sbr.rel (%p416) target = $region76
        $region75: #{tpu_custom_call.1} parent=51 // pred_region
          %420 = dma.done [#allocation12], 512
        $region76: #{tpu_custom_call.1} parent=51 // pred_fallthru
          _
        // Predicated region
        $region77: #{tpu_custom_call.1} parent=51 // pred_check
          %p421 = pneg %p187
        $region78: #{tpu_custom_call.1} parent=51 // pred_check_branch
          %423 = sbr.rel (%p421) target = $region80
        $region79: #{tpu_custom_call.1} parent=51 // pred_region
          %425 = dma.done [#allocation12], 512
        $region80: #{tpu_custom_call.1} parent=51 // pred_fallthru
          _
        %s426 = sand.u32 %s38, 1
        %s427 = scalar_lea.sflag [#allocation3], %s426
        %s428 = sand.u32 %s38, 1
        %s429 = smul.addr %s428, 8
        %s430 = scalar_lea.vmem [#allocation2], %s429
        %p431 = pneg %p51
        %p432 = pneg %p48
        %s433 = sand.u32 %s30, 1
        %s434 = scalar_lea.sflag [#allocation6], %s433
        %s435 = sand.u32 %s64, 1
        %s436 = smul.addr %s435, 8
        %s437 = scalar_lea.vmem [#allocation5], %s436
        %p438 = pneg %p77
        %p439 = pneg %p74
        %s440 = sand.u32 %s30, 1
        %s441 = scalar_lea.sflag [#allocation6], %s440
        %s442 = sand.u32 %s90, 1
        %s443 = smul.addr %s442, 8
        %s444 = scalar_lea.vmem [#allocation7], %s443
        %p445 = pneg %p103
        %p446 = pneg %p100
        %p447 = pneg %p124
        %p448 = pneg %p121
        %p449 = pneg %p145
        %p450 = pneg %p142
        %p451 = pneg %p166
        %p452 = pneg %p163
        %p453 = pneg %p187
        %p454 = pneg %p184
        %p455 = pneg %p208
        %p456 = pneg %p205
        %p457 = pneg %p234
        %p458 = pneg %p231
        %s459 = sand.u32 %s221, 1
        %s460 = scalar_lea.sflag [#allocation4], %s459
        %s461 = sand.u32 %s221, 1
        %s462 = smul.addr %s461, 8
        %s463 = scalar_lea.vmem [#allocation14], %s462
        %v464 = vld [vmem:[%s380] sm:$0xff]
        %v465 = vld [vmem:[%s390] sm:$0xff]
        %v466 = vld [vmem:[%s400] sm:$0xff]
        %v467 = vld [vmem:[#allocation8] sm:$0xff]
        %v468 = vld [vmem:[#allocation8 + $0x8] sm:$0xff]
        %v469 = vld [vmem:[#allocation8 + $0x10] sm:$0xff]
        %v470 = vld [vmem:[#allocation8 + $0x18] sm:$0xff]
        %vm471 = vcmask 261120
        %v473 = vsel %vm471, %v464, 0
        %475 = vmatpush.msra.mxu0 0.0
        %476 = vmatpush.msra.mxu0 0.0
        %477 = vmatpush.msra.mxu0 0.0
        %478 = vmatpush.msra.mxu0 0.0
        %479 = vmatpush.msra.mxu0 0.0
        %480 = vmatpush.msra.mxu0 0.0
        %481 = vmatpush.msra.mxu0 0.0
        %482 = vmatpush.msra.mxu0 0.0
        %483 = vmatpush.msra.mxu0 0.0
        %484 = vmatpush.msra.mxu0 0.0
        %485 = vmatpush.msra.mxu0 0.0
        %486 = vmatpush.msra.mxu0 0.0
        %487 = vmatpush.msra.mxu0 %v470
        %488 = vmatpush.msra.mxu0 %v469
        %489 = vmatpush.msra.mxu0 %v468
        %490 = vmatpush.msra.mxu0 %v467
        %491 = vmatmul.f32.gmra.mxu0 %v473
        %v492 = vpop.f32.mrf.mxu0
        %v493 = vadd.f32 0.0, %v492
        %494 = vdwg.mxu0
        %v495 = vld [vmem:[#allocation10] sm:$0xff]
        %v496 = vld [vmem:[#allocation10 + $0x8] sm:$0xff]
        %v497 = vld [vmem:[#allocation10 + $0x10] sm:$0xff]
        %v498 = vld [vmem:[#allocation10 + $0x18] sm:$0xff]
        %499 = vmatpush.msra.mxu0 0.0
        %500 = vmatpush.msra.mxu0 0.0
        %501 = vmatpush.msra.mxu0 0.0
        %502 = vmatpush.msra.mxu0 0.0
        %503 = vmatpush.msra.mxu0 0.0
        %504 = vmatpush.msra.mxu0 0.0
        %505 = vmatpush.msra.mxu0 0.0
        %506 = vmatpush.msra.mxu0 0.0
        %507 = vmatpush.msra.mxu0 0.0
        %508 = vmatpush.msra.mxu0 0.0
        %509 = vmatpush.msra.mxu0 0.0
        %510 = vmatpush.msra.mxu0 0.0
        %511 = vmatpush.msra.mxu0 %v498
        %512 = vmatpush.msra.mxu0 %v497
        %513 = vmatpush.msra.mxu0 %v496
        %514 = vmatpush.msra.mxu0 %v495
        %515 = vmatmul.f32.gmra.mxu0 %v473
        %v516 = vpop.f32.mrf.mxu0
        %v517 = vadd.f32 0.0, %v516
        %518 = vdwg.mxu0
        %v519 = vld [vmem:[#allocation11] sm:$0xff]
        %v520 = vld [vmem:[#allocation11 + $0x8] sm:$0xff]
        %v521 = vld [vmem:[#allocation11 + $0x10] sm:$0xff]
        %v522 = vld [vmem:[#allocation11 + $0x18] sm:$0xff]
        %523 = vmatpush.msra.mxu0 0.0
        %524 = vmatpush.msra.mxu0 0.0
        %525 = vmatpush.msra.mxu0 0.0
        %526 = vmatpush.msra.mxu0 0.0
        %527 = vmatpush.msra.mxu0 0.0
        %528 = vmatpush.msra.mxu0 0.0
        %529 = vmatpush.msra.mxu0 0.0
        %530 = vmatpush.msra.mxu0 0.0
        %531 = vmatpush.msra.mxu0 0.0
        %532 = vmatpush.msra.mxu0 0.0
        %533 = vmatpush.msra.mxu0 0.0
        %534 = vmatpush.msra.mxu0 0.0
        %535 = vmatpush.msra.mxu0 %v522
        %536 = vmatpush.msra.mxu0 %v521
        %537 = vmatpush.msra.mxu0 %v520
        %538 = vmatpush.msra.mxu0 %v519
        %539 = vmatmul.f32.gmra.mxu0 %v473
        %v540 = vpop.f32.mrf.mxu0
        %v541 = vadd.f32 0.0, %v540
        %542 = vdwg.mxu0
        %544 = vrot.lane.b32.xlu0 %v493, 120
        %v545 = vpop.permute.xlu0 %544
        %547 = vrot.lane.b32.xlu0 %v493, 112
        %v548 = vpop.permute.xlu0 %547
        %550 = vrot.lane.b32.xlu0 %v493, 104
        %v551 = vpop.permute.xlu0 %550
        %v553 = vrot.slane %v548, 4
        %vm554 = vcmask 1047556
        %v555 = vsel %vm554, %v553, %v493
        %v556 = vrot.slane %v493, 4
        %v557 = vsel %vm554, %v548, %v556
        %v559 = vunpack.c.l.s4 1983009808
        %v560 = vunpack.c.0.s8 %v559
        %v561 = vperm.slane %v555, %v560
        %v563 = vunpack.c.l.s4 1983009808
        %v564 = vunpack.c.0.s8 %v563
        %v565 = vperm.slane %v557, %v564
        %v566 = vrot.slane %v551, 4
        %v567 = vsel %vm554, %v566, %v545
        %v568 = vrot.slane %v545, 4
        %v569 = vsel %vm554, %v551, %v568
        %v571 = vunpack.c.l.s4 1983009808
        %v572 = vunpack.c.0.s8 %v571
        %v573 = vperm.slane %v567, %v572
        %v575 = vunpack.c.l.s4 1983009808
        %v576 = vunpack.c.0.s8 %v575
        %v577 = vperm.slane %v569, %v576
        %v578 = vrot.slane %v573, 4
        %v579 = vsel %vm554, %v578, %v561
        %v580 = vrot.slane %v561, 4
        %v581 = vsel %vm554, %v573, %v580
        %v583 = vunpack.c.l.s4 1934713408
        %v584 = vunpack.c.0.s8 %v583
        %v585 = vperm.slane %v579, %v584
        %v587 = vunpack.c.l.s4 1934713408
        %v588 = vunpack.c.0.s8 %v587
        %v589 = vperm.slane %v581, %v588
        %v590 = vrot.slane %v577, 4
        %v591 = vsel %vm554, %v590, %v565
        %v592 = vrot.slane %v565, 4
        %v593 = vsel %vm554, %v577, %v592
        %v595 = vunpack.c.l.s4 1934713408
        %v596 = vunpack.c.0.s8 %v595
        %v597 = vperm.slane %v591, %v596
        %v599 = vunpack.c.l.s4 1934713408
        %v600 = vunpack.c.0.s8 %v599
        %v601 = vperm.slane %v593, %v600
        %v602 = vrot.slane %v585, 4
        %v603 = vsel %vm554, 0.0, %v602
        %v604 = vrot.slane %v589, 4
        %v605 = vsel %vm554, 0.0, %v604
        %v606 = vrot.slane %v597, 4
        %v607 = vsel %vm554, 0.0, %v606
        %v608 = vrot.slane %v601, 4
        %v609 = vsel %vm554, 0.0, %v608
        %v610 = vsel %vm554, %v604, %v585
        %v612 = vunpack.c.l.s4 1983009808
        %v613 = vunpack.c.0.s8 %v612
        %v614 = vperm.slane %v610, %v613
        %v615 = vrot.slane %v605, 4
        %v616 = vsel %vm554, %v615, %v603
        %v618 = vunpack.c.l.s4 1983009808
        %v619 = vunpack.c.0.s8 %v618
        %v620 = vperm.slane %v616, %v619
        %v621 = vsel %vm554, %v608, %v597
        %v623 = vunpack.c.l.s4 1983009808
        %v624 = vunpack.c.0.s8 %v623
        %v625 = vperm.slane %v621, %v624
        %v626 = vrot.slane %v609, 4
        %v627 = vsel %vm554, %v626, %v607
        %v629 = vunpack.c.l.s4 1983009808
        %v630 = vunpack.c.0.s8 %v629
        %v631 = vperm.slane %v627, %v630
        %v632 = vrot.slane %v620, 4
        %v633 = vsel %vm554, %v632, %v614
        %v634 = vrot.slane %v614, 4
        %v635 = vsel %vm554, %v620, %v634
        %v637 = vunpack.c.l.s4 1934713408
        %v638 = vunpack.c.0.s8 %v637
        %v639 = vperm.slane %v633, %v638
        %v641 = vunpack.c.l.s4 1934713408
        %v642 = vunpack.c.0.s8 %v641
        %v643 = vperm.slane %v635, %v642
        %v644 = vrot.slane %v631, 4
        %v645 = vsel %vm554, %v644, %v625
        %v646 = vrot.slane %v625, 4
        %v647 = vsel %vm554, %v631, %v646
        %v649 = vunpack.c.l.s4 1934713408
        %v650 = vunpack.c.0.s8 %v649
        %v651 = vperm.slane %v645, %v650
        %v653 = vunpack.c.l.s4 1934713408
        %v654 = vunpack.c.0.s8 %v653
        %v655 = vperm.slane %v647, %v654
        %v656 = vrot.slane %v651, 4
        %v657 = vsel %vm554, %v656, %v639
        %v658 = vrot.slane %v639, 4
        %v659 = vsel %vm554, %v651, %v658
        %v660 = vrot.slane %v655, 4
        %v661 = vsel %vm554, %v660, %v643
        %v662 = vrot.slane %v643, 4
        %v663 = vsel %vm554, %v655, %v662
        %665 = vrot.lane.b32.xlu0 %v517, 120
        %v666 = vpop.permute.xlu0 %665
        %668 = vrot.lane.b32.xlu0 %v517, 112
        %v669 = vpop.permute.xlu0 %668
        %671 = vrot.lane.b32.xlu0 %v517, 104
        %v672 = vpop.permute.xlu0 %671
        %v674 = vrot.slane %v669, 4
        %v675 = vsel %vm554, %v674, %v517
        %v676 = vrot.slane %v517, 4
        %v677 = vsel %vm554, %v669, %v676
        %v679 = vunpack.c.l.s4 1983009808
        %v680 = vunpack.c.0.s8 %v679
        %v681 = vperm.slane %v675, %v680
        %v683 = vunpack.c.l.s4 1983009808
        %v684 = vunpack.c.0.s8 %v683
        %v685 = vperm.slane %v677, %v684
        %v686 = vrot.slane %v672, 4
        %v687 = vsel %vm554, %v686, %v666
        %v688 = vrot.slane %v666, 4
        %v689 = vsel %vm554, %v672, %v688
        %v691 = vunpack.c.l.s4 1983009808
        %v692 = vunpack.c.0.s8 %v691
        %v693 = vperm.slane %v687, %v692
        %v695 = vunpack.c.l.s4 1983009808
        %v696 = vunpack.c.0.s8 %v695
        %v697 = vperm.slane %v689, %v696
        %v698 = vrot.slane %v693, 4
        %v699 = vsel %vm554, %v698, %v681
        %v700 = vrot.slane %v681, 4
        %v701 = vsel %vm554, %v693, %v700
        %v703 = vunpack.c.l.s4 1934713408
        %v704 = vunpack.c.0.s8 %v703
        %v705 = vperm.slane %v699, %v704
        %v707 = vunpack.c.l.s4 1934713408
        %v708 = vunpack.c.0.s8 %v707
        %v709 = vperm.slane %v701, %v708
        %v710 = vrot.slane %v697, 4
        %v711 = vsel %vm554, %v710, %v685
        %v712 = vrot.slane %v685, 4
        %v713 = vsel %vm554, %v697, %v712
        %v715 = vunpack.c.l.s4 1934713408
        %v716 = vunpack.c.0.s8 %v715
        %v717 = vperm.slane %v711, %v716
        %v719 = vunpack.c.l.s4 1934713408
        %v720 = vunpack.c.0.s8 %v719
        %v721 = vperm.slane %v713, %v720
        %v722 = vrot.slane %v705, 4
        %v723 = vsel %vm554, 0.0, %v722
        %v724 = vrot.slane %v709, 4
        %v725 = vsel %vm554, 0.0, %v724
        %v726 = vrot.slane %v717, 4
        %v727 = vsel %vm554, 0.0, %v726
        %v728 = vrot.slane %v721, 4
        %v729 = vsel %vm554, 0.0, %v728
        %v730 = vsel %vm554, %v724, %v705
        %v732 = vunpack.c.l.s4 1983009808
        %v733 = vunpack.c.0.s8 %v732
        %v734 = vperm.slane %v730, %v733
        %v735 = vrot.slane %v725, 4
        %v736 = vsel %vm554, %v735, %v723
        %v738 = vunpack.c.l.s4 1983009808
        %v739 = vunpack.c.0.s8 %v738
        %v740 = vperm.slane %v736, %v739
        %v741 = vsel %vm554, %v728, %v717
        %v743 = vunpack.c.l.s4 1983009808
        %v744 = vunpack.c.0.s8 %v743
        %v745 = vperm.slane %v741, %v744
        %v746 = vrot.slane %v729, 4
        %v747 = vsel %vm554, %v746, %v727
        %v749 = vunpack.c.l.s4 1983009808
        %v750 = vunpack.c.0.s8 %v749
        %v751 = vperm.slane %v747, %v750
        %v752 = vrot.slane %v740, 4
        %v753 = vsel %vm554, %v752, %v734
        %v754 = vrot.slane %v734, 4
        %v755 = vsel %vm554, %v740, %v754
        %v757 = vunpack.c.l.s4 1934713408
        %v758 = vunpack.c.0.s8 %v757
        %v759 = vperm.slane %v753, %v758
        %v761 = vunpack.c.l.s4 1934713408
        %v762 = vunpack.c.0.s8 %v761
        %v763 = vperm.slane %v755, %v762
        %v764 = vrot.slane %v751, 4
        %v765 = vsel %vm554, %v764, %v745
        %v766 = vrot.slane %v745, 4
        %v767 = vsel %vm554, %v751, %v766
        %v769 = vunpack.c.l.s4 1934713408
        %v770 = vunpack.c.0.s8 %v769
        %v771 = vperm.slane %v765, %v770
        %v773 = vunpack.c.l.s4 1934713408
        %v774 = vunpack.c.0.s8 %v773
        %v775 = vperm.slane %v767, %v774
        %v776 = vrot.slane %v771, 4
        %v777 = vsel %vm554, %v776, %v759
        %v778 = vrot.slane %v759, 4
        %v779 = vsel %vm554, %v771, %v778
        %v780 = vrot.slane %v775, 4
        %v781 = vsel %vm554, %v780, %v763
        %v782 = vrot.slane %v763, 4
        %v783 = vsel %vm554, %v775, %v782
        %785 = vrot.lane.b32.xlu0 %v541, 120
        %v786 = vpop.permute.xlu0 %785
        %788 = vrot.lane.b32.xlu0 %v541, 112
        %v789 = vpop.permute.xlu0 %788
        %791 = vrot.lane.b32.xlu0 %v541, 104
        %v792 = vpop.permute.xlu0 %791
        %v794 = vrot.slane %v789, 4
        %v795 = vsel %vm554, %v794, %v541
        %v796 = vrot.slane %v541, 4
        %v797 = vsel %vm554, %v789, %v796
        %v799 = vunpack.c.l.s4 1983009808
        %v800 = vunpack.c.0.s8 %v799
        %v801 = vperm.slane %v795, %v800
        %v803 = vunpack.c.l.s4 1983009808
        %v804 = vunpack.c.0.s8 %v803
        %v805 = vperm.slane %v797, %v804
        %v806 = vrot.slane %v792, 4
        %v807 = vsel %vm554, %v806, %v786
        %v808 = vrot.slane %v786, 4
        %v809 = vsel %vm554, %v792, %v808
        %v811 = vunpack.c.l.s4 1983009808
        %v812 = vunpack.c.0.s8 %v811
        %v813 = vperm.slane %v807, %v812
        %v815 = vunpack.c.l.s4 1983009808
        %v816 = vunpack.c.0.s8 %v815
        %v817 = vperm.slane %v809, %v816
        %v818 = vrot.slane %v813, 4
        %v819 = vsel %vm554, %v818, %v801
        %v820 = vrot.slane %v801, 4
        %v821 = vsel %vm554, %v813, %v820
        %v823 = vunpack.c.l.s4 1934713408
        %v824 = vunpack.c.0.s8 %v823
        %v825 = vperm.slane %v819, %v824
        %v827 = vunpack.c.l.s4 1934713408
        %v828 = vunpack.c.0.s8 %v827
        %v829 = vperm.slane %v821, %v828
        %v830 = vrot.slane %v817, 4
        %v831 = vsel %vm554, %v830, %v805
        %v832 = vrot.slane %v805, 4
        %v833 = vsel %vm554, %v817, %v832
        %v835 = vunpack.c.l.s4 1934713408
        %v836 = vunpack.c.0.s8 %v835
        %v837 = vperm.slane %v831, %v836
        %v839 = vunpack.c.l.s4 1934713408
        %v840 = vunpack.c.0.s8 %v839
        %v841 = vperm.slane %v833, %v840
        %v842 = vrot.slane %v825, 4
        %v843 = vsel %vm554, 0.0, %v842
        %v844 = vrot.slane %v829, 4
        %v845 = vsel %vm554, 0.0, %v844
        %v846 = vrot.slane %v837, 4
        %v847 = vsel %vm554, 0.0, %v846
        %v848 = vrot.slane %v841, 4
        %v849 = vsel %vm554, 0.0, %v848
        %v850 = vsel %vm554, %v844, %v825
        %v852 = vunpack.c.l.s4 1983009808
        %v853 = vunpack.c.0.s8 %v852
        %v854 = vperm.slane %v850, %v853
        %v855 = vrot.slane %v845, 4
        %v856 = vsel %vm554, %v855, %v843
        %v858 = vunpack.c.l.s4 1983009808
        %v859 = vunpack.c.0.s8 %v858
        %v860 = vperm.slane %v856, %v859
        %v861 = vsel %vm554, %v848, %v837
        %v863 = vunpack.c.l.s4 1983009808
        %v864 = vunpack.c.0.s8 %v863
        %v865 = vperm.slane %v861, %v864
        %v866 = vrot.slane %v849, 4
        %v867 = vsel %vm554, %v866, %v847
        %v869 = vunpack.c.l.s4 1983009808
        %v870 = vunpack.c.0.s8 %v869
        %v871 = vperm.slane %v867, %v870
        %v872 = vrot.slane %v860, 4
        %v873 = vsel %vm554, %v872, %v854
        %v874 = vrot.slane %v854, 4
        %v875 = vsel %vm554, %v860, %v874
        %v877 = vunpack.c.l.s4 1934713408
        %v878 = vunpack.c.0.s8 %v877
        %v879 = vperm.slane %v873, %v878
        %v881 = vunpack.c.l.s4 1934713408
        %v882 = vunpack.c.0.s8 %v881
        %v883 = vperm.slane %v875, %v882
        %v884 = vrot.slane %v871, 4
        %v885 = vsel %vm554, %v884, %v865
        %v886 = vrot.slane %v865, 4
        %v887 = vsel %vm554, %v871, %v886
        %v889 = vunpack.c.l.s4 1934713408
        %v890 = vunpack.c.0.s8 %v889
        %v891 = vperm.slane %v885, %v890
        %v893 = vunpack.c.l.s4 1934713408
        %v894 = vunpack.c.0.s8 %v893
        %v895 = vperm.slane %v887, %v894
        %v896 = vrot.slane %v891, 4
        %v897 = vsel %vm554, %v896, %v879
        %v898 = vrot.slane %v879, 4
        %v899 = vsel %vm554, %v891, %v898
        %v900 = vrot.slane %v895, 4
        %v901 = vsel %vm554, %v900, %v883
        %v902 = vrot.slane %v883, 4
        %v903 = vsel %vm554, %v895, %v902
        %v904 = vmul.f32 %v657, %v465
        %v905 = vmul.f32 %v659, %v465
        %v906 = vmul.f32 %v661, %v465
        %v907 = vmul.f32 %v663, %v465
        %vm908 = vcmask 1047616
        %909 = vrot.lane.b32.xlu0 %v657, 8
        %v910 = vpop.permute.xlu0 %909
        %v911 = vsel %vm908, %v910, %v657
        %912 = vrot.lane.b32.xlu0 %v659, 8
        %v913 = vpop.permute.xlu0 %912
        %v914 = vsel %vm908, %v913, %v659
        %915 = vrot.lane.b32.xlu0 %v661, 8
        %v916 = vpop.permute.xlu0 %915
        %v917 = vsel %vm908, %v916, %v661
        %918 = vrot.lane.b32.xlu0 %v663, 8
        %v919 = vpop.permute.xlu0 %918
        %v920 = vsel %vm908, %v919, %v663
        %921 = vrot.lane.b32.xlu0 %v911, 8
        %v922 = vpop.permute.xlu0 %921
        %923 = vrot.lane.b32.xlu0 %v914, 8
        %v924 = vpop.permute.xlu0 %923
        %925 = vrot.lane.b32.xlu0 %v917, 8
        %v926 = vpop.permute.xlu0 %925
        %927 = vrot.lane.b32.xlu0 %v920, 8
        %v928 = vpop.permute.xlu0 %927
        %v929 = vsel %vm908, %v922, %v657
        %v930 = vsel %vm908, %v924, %v659
        %v931 = vsel %vm908, %v926, %v661
        %v932 = vsel %vm908, %v928, %v663
        %934 = vrot.lane.b32.xlu0 %v466, 4
        %v935 = vpop.permute.xlu0 %934
        %v937 = vmul.f32 %v929, %v935
        %v938 = vmul.f32 %v930, %v935
        %v939 = vmul.f32 %v931, %v935
        %v940 = vmul.f32 %v932, %v935
        %945 = vrot.lane.b32.xlu0 %v937, 124
        %v946 = vpop.permute.xlu0 %945
        %947 = vrot.lane.b32.xlu0 %v938, 124
        %v948 = vpop.permute.xlu0 %947
        %949 = vrot.lane.b32.xlu0 %v939, 124
        %v950 = vpop.permute.xlu0 %949
        %951 = vrot.lane.b32.xlu0 %v940, 124
        %v952 = vpop.permute.xlu0 %951
        %v957 = vadd.f32 %v904, %v946
        %v958 = vadd.f32 %v905, %v948
        %v959 = vadd.f32 %v906, %v950
        %v960 = vadd.f32 %v907, %v952
        %v961 = vmul.f32 %v777, %v465
        %v962 = vmul.f32 %v779, %v465
        %v963 = vmul.f32 %v781, %v465
        %v964 = vmul.f32 %v783, %v465
        %965 = vrot.lane.b32.xlu0 %v777, 8
        %v966 = vpop.permute.xlu0 %965
        %v967 = vsel %vm908, %v966, %v777
        %968 = vrot.lane.b32.xlu0 %v779, 8
        %v969 = vpop.permute.xlu0 %968
        %v970 = vsel %vm908, %v969, %v779
        %971 = vrot.lane.b32.xlu0 %v781, 8
        %v972 = vpop.permute.xlu0 %971
        %v973 = vsel %vm908, %v972, %v781
        %974 = vrot.lane.b32.xlu0 %v783, 8
        %v975 = vpop.permute.xlu0 %974
        %v976 = vsel %vm908, %v975, %v783
        %977 = vrot.lane.b32.xlu0 %v967, 8
        %v978 = vpop.permute.xlu0 %977
        %979 = vrot.lane.b32.xlu0 %v970, 8
        %v980 = vpop.permute.xlu0 %979
        %981 = vrot.lane.b32.xlu0 %v973, 8
        %v982 = vpop.permute.xlu0 %981
        %983 = vrot.lane.b32.xlu0 %v976, 8
        %v984 = vpop.permute.xlu0 %983
        %v985 = vsel %vm908, %v978, %v777
        %v986 = vsel %vm908, %v980, %v779
        %v987 = vsel %vm908, %v982, %v781
        %v988 = vsel %vm908, %v984, %v783
        %v989 = vmul.f32 %v985, %v935
        %v990 = vmul.f32 %v986, %v935
        %v991 = vmul.f32 %v987, %v935
        %v992 = vmul.f32 %v988, %v935
        %997 = vrot.lane.b32.xlu0 %v989, 124
        %v998 = vpop.permute.xlu0 %997
        %999 = vrot.lane.b32.xlu0 %v990, 124
        %v1000 = vpop.permute.xlu0 %999
        %1001 = vrot.lane.b32.xlu0 %v991, 124
        %v1002 = vpop.permute.xlu0 %1001
        %1003 = vrot.lane.b32.xlu0 %v992, 124
        %v1004 = vpop.permute.xlu0 %1003
        %v1009 = vadd.f32 %v961, %v998
        %v1010 = vadd.f32 %v962, %v1000
        %v1011 = vadd.f32 %v963, %v1002
        %v1012 = vadd.f32 %v964, %v1004
        %v1013 = vmul.f32 %v957, 0.35355338
        %v1014 = vmul.f32 %v958, 0.35355338
        %v1015 = vmul.f32 %v959, 0.35355338
        %v1016 = vmul.f32 %v960, 0.35355338
        %vm1017 = vcmask 64512
        %v1019 = vsel %vm1017, %v1013, 0
        %v1022 = vsel %vm1017, %v1009, 0
        %1024 = vmatpush.xpose.msra.mxu0 0.0
        %1025 = vmatpush.xpose.msra.mxu0 0.0
        %1026 = vmatpush.xpose.msra.mxu0 0.0
        %1027 = vmatpush.xpose.msra.mxu0 0.0
        %1028 = vmatpush.xpose.msra.mxu0 0.0
        %1029 = vmatpush.xpose.msra.mxu0 0.0
        %1030 = vmatpush.xpose.msra.mxu0 0.0
        %1031 = vmatpush.xpose.msra.mxu0 0.0
        %1032 = vmatpush.xpose.msra.mxu0 0.0
        %1033 = vmatpush.xpose.msra.mxu0 0.0
        %1034 = vmatpush.xpose.msra.mxu0 0.0
        %1035 = vmatpush.xpose.msra.mxu0 0.0
        %1036 = vmatpush.xpose.msra.mxu0 0.0
        %1037 = vmatpush.xpose.msra.mxu0 0.0
        %1038 = vmatpush.xpose.msra.mxu0 0.0
        %1039 = vmatpush.xpose.msra.mxu0 %v1022
        %1040 = vmatmul.f32.gmra.mxu0 %v1019
        %v1041 = vpop.f32.mrf.mxu0
        %v1042 = vadd.f32 0.0, %v1041
        %1043 = vdwg.mxu0
        %v1045 = vsel %vm1017, %v1014, 0
        %v1048 = vsel %vm1017, %v1010, 0
        %1050 = vmatpush.xpose.msra.mxu0 0.0
        %1051 = vmatpush.xpose.msra.mxu0 0.0
        %1052 = vmatpush.xpose.msra.mxu0 0.0
        %1053 = vmatpush.xpose.msra.mxu0 0.0
        %1054 = vmatpush.xpose.msra.mxu0 0.0
        %1055 = vmatpush.xpose.msra.mxu0 0.0
        %1056 = vmatpush.xpose.msra.mxu0 0.0
        %1057 = vmatpush.xpose.msra.mxu0 0.0
        %1058 = vmatpush.xpose.msra.mxu0 0.0
        %1059 = vmatpush.xpose.msra.mxu0 0.0
        %1060 = vmatpush.xpose.msra.mxu0 0.0
        %1061 = vmatpush.xpose.msra.mxu0 0.0
        %1062 = vmatpush.xpose.msra.mxu0 0.0
        %1063 = vmatpush.xpose.msra.mxu0 0.0
        %1064 = vmatpush.xpose.msra.mxu0 0.0
        %1065 = vmatpush.xpose.msra.mxu0 %v1048
        %1066 = vmatmul.f32.gmra.mxu0 %v1045
        %v1067 = vpop.f32.mrf.mxu0
        %v1068 = vadd.f32 0.0, %v1067
        %1069 = vdwg.mxu0
        %v1071 = vsel %vm1017, %v1015, 0
        %v1074 = vsel %vm1017, %v1011, 0
        %1076 = vmatpush.xpose.msra.mxu0 0.0
        %1077 = vmatpush.xpose.msra.mxu0 0.0
        %1078 = vmatpush.xpose.msra.mxu0 0.0
        %1079 = vmatpush.xpose.msra.mxu0 0.0
        %1080 = vmatpush.xpose.msra.mxu0 0.0
        %1081 = vmatpush.xpose.msra.mxu0 0.0
        %1082 = vmatpush.xpose.msra.mxu0 0.0
        %1083 = vmatpush.xpose.msra.mxu0 0.0
        %1084 = vmatpush.xpose.msra.mxu0 0.0
        %1085 = vmatpush.xpose.msra.mxu0 0.0
        %1086 = vmatpush.xpose.msra.mxu0 0.0
        %1087 = vmatpush.xpose.msra.mxu0 0.0
        %1088 = vmatpush.xpose.msra.mxu0 0.0
        %1089 = vmatpush.xpose.msra.mxu0 0.0
        %1090 = vmatpush.xpose.msra.mxu0 0.0
        %1091 = vmatpush.xpose.msra.mxu0 %v1074
        %1092 = vmatmul.f32.gmra.mxu0 %v1071
        %v1093 = vpop.f32.mrf.mxu0
        %v1094 = vadd.f32 0.0, %v1093
        %1095 = vdwg.mxu0
        %v1097 = vsel %vm1017, %v1016, 0
        %v1100 = vsel %vm1017, %v1012, 0
        %1102 = vmatpush.xpose.msra.mxu0 0.0
        %1103 = vmatpush.xpose.msra.mxu0 0.0
        %1104 = vmatpush.xpose.msra.mxu0 0.0
        %1105 = vmatpush.xpose.msra.mxu0 0.0
        %1106 = vmatpush.xpose.msra.mxu0 0.0
        %1107 = vmatpush.xpose.msra.mxu0 0.0
        %1108 = vmatpush.xpose.msra.mxu0 0.0
        %1109 = vmatpush.xpose.msra.mxu0 0.0
        %1110 = vmatpush.xpose.msra.mxu0 0.0
        %1111 = vmatpush.xpose.msra.mxu0 0.0
        %1112 = vmatpush.xpose.msra.mxu0 0.0
        %1113 = vmatpush.xpose.msra.mxu0 0.0
        %1114 = vmatpush.xpose.msra.mxu0 0.0
        %1115 = vmatpush.xpose.msra.mxu0 0.0
        %1116 = vmatpush.xpose.msra.mxu0 0.0
        %1117 = vmatpush.xpose.msra.mxu0 %v1100
        %1118 = vmatmul.f32.gmra.mxu0 %v1097
        %v1119 = vpop.f32.mrf.mxu0
        %v1120 = vadd.f32 0.0, %v1119
        %1121 = vdwg.mxu0
        %v1122 = vsel %vm1017, %v1042, -inf
        %1123 = vmax.xlane.f32.xlu0 %v1122
        %v1124 = vpop.xlane.xlu0 %1123
        %v1125 = vsel %vm1017, %v1068, -inf
        %1126 = vmax.xlane.f32.xlu0 %v1125
        %v1127 = vpop.xlane.xlu0 %1126
        %v1128 = vsel %vm1017, %v1094, -inf
        %1129 = vmax.xlane.f32.xlu0 %v1128
        %v1130 = vpop.xlane.xlu0 %1129
        %v1131 = vsel %vm1017, %v1120, -inf
        %1132 = vmax.xlane.f32.xlu0 %v1131
        %v1133 = vpop.xlane.xlu0 %1132
        %v1134 = vsub.f32 %v1042, %v1124
        %v1135 = vsub.f32 %v1068, %v1127
        %v1136 = vsub.f32 %v1094, %v1130
        %v1137 = vsub.f32 %v1120, %v1133
        %v1138 = vmul.f32 %v1134, 1.442695
        %v1139 = vpow.pop %v1138
        %v1140 = vmul.f32 %v1135, 1.442695
        %v1141 = vpow.pop %v1140
        %v1142 = vmul.f32 %v1136, 1.442695
        %v1143 = vpow.pop %v1142
        %v1144 = vmul.f32 %v1137, 1.442695
        %v1145 = vpow.pop %v1144
        %v1146 = vsel %vm1017, %v1139, 0.0
        %1147 = vadd.xlane.f32.xlu0 %v1146
        %v1148 = vpop.xlane.xlu0 %1147
        %v1149 = vsel %vm1017, %v1141, 0.0
        %1150 = vadd.xlane.f32.xlu0 %v1149
        %v1151 = vpop.xlane.xlu0 %1150
        %v1152 = vsel %vm1017, %v1143, 0.0
        %1153 = vadd.xlane.f32.xlu0 %v1152
        %v1154 = vpop.xlane.xlu0 %1153
        %v1155 = vsel %vm1017, %v1145, 0.0
        %1156 = vadd.xlane.f32.xlu0 %v1155
        %v1157 = vpop.xlane.xlu0 %1156
        %v1158 = vrcp.pop %v1148
        %v1159 = vrcp.pop %v1151
        %v1160 = vrcp.pop %v1154
        %v1161 = vrcp.pop %v1157
        %v1162 = vmul.f32 %v1139, %v1158
        %v1163 = vmul.f32 %v1141, %v1159
        %v1164 = vmul.f32 %v1143, %v1160
        %v1165 = vmul.f32 %v1145, %v1161
        %v1167 = vsel %vm1017, %v1162, 0
        %1169 = vmatpush.msra.mxu0 0.0
        %1170 = vmatpush.msra.mxu0 0.0
        %1171 = vmatpush.msra.mxu0 0.0
        %1172 = vmatpush.msra.mxu0 0.0
        %1173 = vmatpush.msra.mxu0 0.0
        %1174 = vmatpush.msra.mxu0 0.0
        %1175 = vmatpush.msra.mxu0 0.0
        %1176 = vmatpush.msra.mxu0 0.0
        %1177 = vmatpush.msra.mxu0 0.0
        %1178 = vmatpush.msra.mxu0 0.0
        %1179 = vmatpush.msra.mxu0 0.0
        %1180 = vmatpush.msra.mxu0 0.0
        %1181 = vmatpush.msra.mxu0 0.0
        %1182 = vmatpush.msra.mxu0 0.0
        %1183 = vmatpush.msra.mxu0 0.0
        %1184 = vmatpush.msra.mxu0 %v897
        %1185 = vmatmul.f32.gmra.mxu0 %v1167
        %v1186 = vpop.f32.mrf.mxu0
        %v1187 = vadd.f32 0.0, %v1186
        %1188 = vdwg.mxu0
        %v1190 = vsel %vm1017, %v1163, 0
        %1192 = vmatpush.msra.mxu0 0.0
        %1193 = vmatpush.msra.mxu0 0.0
        %1194 = vmatpush.msra.mxu0 0.0
        %1195 = vmatpush.msra.mxu0 0.0
        %1196 = vmatpush.msra.mxu0 0.0
        %1197 = vmatpush.msra.mxu0 0.0
        %1198 = vmatpush.msra.mxu0 0.0
        %1199 = vmatpush.msra.mxu0 0.0
        %1200 = vmatpush.msra.mxu0 0.0
        %1201 = vmatpush.msra.mxu0 0.0
        %1202 = vmatpush.msra.mxu0 0.0
        %1203 = vmatpush.msra.mxu0 0.0
        %1204 = vmatpush.msra.mxu0 0.0
        %1205 = vmatpush.msra.mxu0 0.0
        %1206 = vmatpush.msra.mxu0 0.0
        %1207 = vmatpush.msra.mxu0 %v899
        %1208 = vmatmul.f32.gmra.mxu0 %v1190
        %v1209 = vpop.f32.mrf.mxu0
        %v1210 = vadd.f32 0.0, %v1209
        %1211 = vdwg.mxu0
        %v1213 = vsel %vm1017, %v1164, 0
        %1215 = vmatpush.msra.mxu0 0.0
        %1216 = vmatpush.msra.mxu0 0.0
        %1217 = vmatpush.msra.mxu0 0.0
        %1218 = vmatpush.msra.mxu0 0.0
        %1219 = vmatpush.msra.mxu0 0.0
        %1220 = vmatpush.msra.mxu0 0.0
        %1221 = vmatpush.msra.mxu0 0.0
        %1222 = vmatpush.msra.mxu0 0.0
        %1223 = vmatpush.msra.mxu0 0.0
        %1224 = vmatpush.msra.mxu0 0.0
        %1225 = vmatpush.msra.mxu0 0.0
        %1226 = vmatpush.msra.mxu0 0.0
        %1227 = vmatpush.msra.mxu0 0.0
        %1228 = vmatpush.msra.mxu0 0.0
        %1229 = vmatpush.msra.mxu0 0.0
        %1230 = vmatpush.msra.mxu0 %v901
        %1231 = vmatmul.f32.gmra.mxu0 %v1213
        %v1232 = vpop.f32.mrf.mxu0
        %v1233 = vadd.f32 0.0, %v1232
        %1234 = vdwg.mxu0
        %v1236 = vsel %vm1017, %v1165, 0
        %1238 = vmatpush.msra.mxu0 0.0
        %1239 = vmatpush.msra.mxu0 0.0
        %1240 = vmatpush.msra.mxu0 0.0
        %1241 = vmatpush.msra.mxu0 0.0
        %1242 = vmatpush.msra.mxu0 0.0
        %1243 = vmatpush.msra.mxu0 0.0
        %1244 = vmatpush.msra.mxu0 0.0
        %1245 = vmatpush.msra.mxu0 0.0
        %1246 = vmatpush.msra.mxu0 0.0
        %1247 = vmatpush.msra.mxu0 0.0
        %1248 = vmatpush.msra.mxu0 0.0
        %1249 = vmatpush.msra.mxu0 0.0
        %1250 = vmatpush.msra.mxu0 0.0
        %1251 = vmatpush.msra.mxu0 0.0
        %1252 = vmatpush.msra.mxu0 0.0
        %1253 = vmatpush.msra.mxu0 %v903
        %1254 = vmatmul.f32.gmra.mxu0 %v1236
        %v1255 = vpop.f32.mrf.mxu0
        %v1256 = vadd.f32 0.0, %v1255
        %1257 = vdwg.mxu0
        %v1258 = vrot.slane %v1233, 4
        %v1259 = vsel %vm554, %v1258, %v1187
        %v1260 = vrot.slane %v1187, 4
        %v1261 = vsel %vm554, %v1233, %v1260
        %v1263 = vunpack.c.l.s4 1983009808
        %v1264 = vunpack.c.0.s8 %v1263
        %v1265 = vperm.slane %v1259, %v1264
        %v1267 = vunpack.c.l.s4 1983009808
        %v1268 = vunpack.c.0.s8 %v1267
        %v1269 = vperm.slane %v1261, %v1268
        %v1270 = vrot.slane %v1256, 4
        %v1271 = vsel %vm554, %v1270, %v1210
        %v1272 = vrot.slane %v1210, 4
        %v1273 = vsel %vm554, %v1256, %v1272
        %v1275 = vunpack.c.l.s4 1983009808
        %v1276 = vunpack.c.0.s8 %v1275
        %v1277 = vperm.slane %v1271, %v1276
        %v1279 = vunpack.c.l.s4 1983009808
        %v1280 = vunpack.c.0.s8 %v1279
        %v1281 = vperm.slane %v1273, %v1280
        %v1282 = vrot.slane %v1277, 4
        %v1283 = vsel %vm554, %v1282, %v1265
        %v1284 = vrot.slane %v1265, 4
        %v1285 = vsel %vm554, %v1277, %v1284
        %v1287 = vunpack.c.l.s4 1934713408
        %v1288 = vunpack.c.0.s8 %v1287
        %v1289 = vperm.slane %v1283, %v1288
        %v1291 = vunpack.c.l.s4 1934713408
        %v1292 = vunpack.c.0.s8 %v1291
        %v1293 = vperm.slane %v1285, %v1292
        %v1294 = vrot.slane %v1281, 4
        %v1295 = vsel %vm554, %v1294, %v1269
        %v1296 = vrot.slane %v1269, 4
        %v1297 = vsel %vm554, %v1281, %v1296
        %v1299 = vunpack.c.l.s4 1934713408
        %v1300 = vunpack.c.0.s8 %v1299
        %v1301 = vperm.slane %v1295, %v1300
        %v1303 = vunpack.c.l.s4 1934713408
        %v1304 = vunpack.c.0.s8 %v1303
        %v1305 = vperm.slane %v1297, %v1304
        %v1306 = vrot.slane %v1289, 4
        %v1307 = vsel %vm554, 0.0, %v1306
        %v1308 = vrot.slane %v1293, 4
        %v1309 = vsel %vm554, 0.0, %v1308
        %v1310 = vrot.slane %v1301, 4
        %v1311 = vsel %vm554, 0.0, %v1310
        %v1312 = vrot.slane %v1305, 4
        %v1313 = vsel %vm554, 0.0, %v1312
        %v1314 = vsel %vm554, %v1308, %v1289
        %v1316 = vunpack.c.l.s4 1983009808
        %v1317 = vunpack.c.0.s8 %v1316
        %v1318 = vperm.slane %v1314, %v1317
        %v1319 = vrot.slane %v1309, 4
        %v1320 = vsel %vm554, %v1319, %v1307
        %v1322 = vunpack.c.l.s4 1983009808
        %v1323 = vunpack.c.0.s8 %v1322
        %v1324 = vperm.slane %v1320, %v1323
        %v1325 = vsel %vm554, %v1312, %v1301
        %v1327 = vunpack.c.l.s4 1983009808
        %v1328 = vunpack.c.0.s8 %v1327
        %v1329 = vperm.slane %v1325, %v1328
        %v1330 = vrot.slane %v1313, 4
        %v1331 = vsel %vm554, %v1330, %v1311
        %v1333 = vunpack.c.l.s4 1983009808
        %v1334 = vunpack.c.0.s8 %v1333
        %v1335 = vperm.slane %v1331, %v1334
        %v1336 = vrot.slane %v1324, 4
        %v1337 = vsel %vm554, %v1336, %v1318
        %v1338 = vrot.slane %v1318, 4
        %v1339 = vsel %vm554, %v1324, %v1338
        %v1341 = vunpack.c.l.s4 1934713408
        %v1342 = vunpack.c.0.s8 %v1341
        %v1343 = vperm.slane %v1337, %v1342
        %v1345 = vunpack.c.l.s4 1934713408
        %v1346 = vunpack.c.0.s8 %v1345
        %v1347 = vperm.slane %v1339, %v1346
        %v1348 = vrot.slane %v1335, 4
        %v1349 = vsel %vm554, %v1348, %v1329
        %v1350 = vrot.slane %v1329, 4
        %v1351 = vsel %vm554, %v1335, %v1350
        %v1353 = vunpack.c.l.s4 1934713408
        %v1354 = vunpack.c.0.s8 %v1353
        %v1355 = vperm.slane %v1349, %v1354
        %v1357 = vunpack.c.l.s4 1934713408
        %v1358 = vunpack.c.0.s8 %v1357
        %v1359 = vperm.slane %v1351, %v1358
        %v1360 = vrot.slane %v1355, 4
        %v1361 = vsel %vm554, %v1360, %v1343
        %v1362 = vrot.slane %v1343, 4
        %v1363 = vsel %vm554, %v1355, %v1362
        %v1364 = vrot.slane %v1359, 4
        %v1365 = vsel %vm554, %v1364, %v1347
        %v1366 = vrot.slane %v1347, 4
        %v1367 = vsel %vm554, %v1359, %v1366
        %1369 = vrot.lane.b32.xlu0 %v1363, 8
        %v1370 = vpop.permute.xlu0 %1369
        %1373 = vrot.lane.b32.xlu0 %v1365, 16
        %v1374 = vpop.permute.xlu0 %1373
        %1377 = vrot.lane.b32.xlu0 %v1367, 24
        %v1378 = vpop.permute.xlu0 %1377
        %v1380 = vsel %vm1017, %v1361, %v1370
        %vm1381 = vcmask 130048
        %v1382 = vsel %vm1381, %v1380, %v1374
        %vm1383 = vcmask 195584
        %v1384 = vsel %vm1383, %v1382, %v1378
        %v1385 = vld [vmem:[#allocation13] sm:$0xff]
        %v1386 = vld [vmem:[#allocation13 + $0x8] sm:$0xff]
        %v1387 = vld [vmem:[#allocation13 + $0x10] sm:$0xff]
        %v1388 = vld [vmem:[#allocation13 + $0x18] sm:$0xff]
        %v1389 = vld [vmem:[%s7] sm:$0x1]
        %v1391 = vperm.slane %v1389, 0
        %v1394 = vsel %vm471, %v1384, 0
        %1396 = vmatpush.msra.mxu0 0.0
        %1397 = vmatpush.msra.mxu0 0.0
        %1398 = vmatpush.msra.mxu0 0.0
        %1399 = vmatpush.msra.mxu0 0.0
        %1400 = vmatpush.msra.mxu0 0.0
        %1401 = vmatpush.msra.mxu0 0.0
        %1402 = vmatpush.msra.mxu0 0.0
        %1403 = vmatpush.msra.mxu0 0.0
        %1404 = vmatpush.msra.mxu0 0.0
        %1405 = vmatpush.msra.mxu0 0.0
        %1406 = vmatpush.msra.mxu0 0.0
        %1407 = vmatpush.msra.mxu0 0.0
        %1408 = vmatpush.msra.mxu0 %v1388
        %1409 = vmatpush.msra.mxu0 %v1387
        %1410 = vmatpush.msra.mxu0 %v1386
        %1411 = vmatpush.msra.mxu0 %v1385
        %1412 = vmatmul.f32.gmra.mxu0 %v1394
        %v1413 = vpop.f32.mrf.mxu0
        %v1414 = vadd.f32 %v1391, %v1413
        %1415 = vdwg.mxu0
        %1416 = vst.msk [vmem:[%s463] sm:$0xff] %vm471, %v1414
        %s1417 = sand.u32 %s221, 1
        %s1418 = scalar_lea.sflag [#allocation4], %s1417
        %s1419 = sand.u32 %s221, 1
        %s1420 = smul.addr %s1419, 8
        %s1421 = scalar_lea.vmem [#allocation14], %s1420
        // Predicated region
        $region81: #{tpu_custom_call.1} parent=51 // pred_check
          %p1422 = pneg %p231
        $region82: #{tpu_custom_call.1} parent=51 // pred_check_branch
          %1424 = sbr.rel (%p1422) target = $region84
        $region83: #{tpu_custom_call.1} parent=51 // pred_region
          %1426 = vsyncadd %s1418, 0
          %s1427 = smul.addr %s30, 8
          %s1428 = scalar_lea.hbm %s8, %s1427
          %s1430 = sshll.u32 %s1421, 4
          %s1431 = int_to_ptr.vmem [resolvable:$true] %s1430
          %s1432 = sshll.u32 %s1428, 4
          %s1433 = int_to_ptr.hbm [resolvable:$true] %s1432
          %1435 = dma.vmem_to_hbm [thread:$0]  %s1431, 128, %s1433, %s1418
        $region84: #{tpu_custom_call.1} parent=51 // pred_fallthru
          _
      $region52: #{tpu_custom_call.1} parent=5 // pred_fallthru
        _
      %p1436 = scmp.le.s32.totalorder 2, %s25
      // Predicated region
      $region85: #{tpu_custom_call.1} parent=5 // pred_check
        %p1437 = pneg %p1436
      $region86: #{tpu_custom_call.1} parent=5 // pred_check_branch
        %1439 = sbr.rel (%p1437) target = $region88
      $region87: #{tpu_custom_call.1} parent=5 // pred_region
        %s1440 = ssub.s32 %s25, 2
        // Predicated region
        $region89: #{tpu_custom_call.1} parent=87 // pred_check
          %p1441 = pneg %p237
        $region90: #{tpu_custom_call.1} parent=87 // pred_check_branch
          %1443 = sbr.rel (%p1441) target = $region92
        $region91: #{tpu_custom_call.1} parent=87 // pred_region
          %s1444 = sand.u32 %s222, 1
          %s1445 = scalar_lea.sflag [#allocation4], %s1444
          %s1446 = sand.u32 %s222, 1
          %s1447 = smul.addr %s1446, 8
          %s1448 = scalar_lea.vmem [#allocation14], %s1447
          %1450 = dma.done %s1445, 128
        $region92: #{tpu_custom_call.1} parent=87 // pred_fallthru
          _
      $region88: #{tpu_custom_call.1} parent=5 // pred_fallthru
        _
    $region6: #{tpu_custom_call.1} parent=1 // loop_footer
      %s29 = sadd.s32 1, %s25
    $region7: #{tpu_custom_call.1} parent=1 // loop_footer_branch
      %24 = sbr.rel target = $region3
    $region8: #{tpu_custom_call.1} parent=1 // loop_exit
      _
    %1451 = vsyncpa [#allocation3], 1
    %s1452 = scalar_lea.sflag [#allocation3], 1
    %1453 = vsyncpa %s1452, 1
    %1454 = vsyncpa [#allocation6], 1
    %s1455 = scalar_lea.sflag [#allocation6], 1
    %1456 = vsyncpa %s1455, 1
    %1457 = vsyncpa [#allocation9], 1
    %1458 = vsyncpa [#allocation12], 1
    %1459 = vsyncpa [#allocation4], 1
    %s1460 = scalar_lea.sflag [#allocation4], 1
    %1461 = vsyncpa %s1460, 1

</llo_original>
